<compile_context>
chip_gen: v6e
topology: v6e:2x2x1
jax: 0.10.0
libtpu: 0.0.40
codegen_flags: <defaults>
</compile_context>

<pallas_src>
import numpy as np
import jax
import jax.numpy as jnp
from jax.experimental import pallas as pl
from jax.experimental.pallas import tpu as pltpu

EPS = 1e-5  # nn.InstanceNorm3d default


# ---------------------------------------------------------------------------
# Fused Pallas kernel: conv1x1x1 + InstanceNorm + ReLU + AdaptiveAvgPool(4,4,4) + Linear
# ---------------------------------------------------------------------------
def gating_fused_kernel(x_ref, w1_ref, b1_ref, phw_ref, wfc_ref, bfc_ref, o_ref):
    """Per batch element.

    x_ref:   (1, Cin, D, HW)  VMEM  input (channels-first, spatial = D x (H*W))
    w1_ref:  (Cmid, Cin)      SMEM  1x1x1 conv weight (scalars)
    b1_ref:  (Cmid,)          SMEM  conv bias (scalars)
    phw_ref: (HW, 16)         VMEM  (h, w) adaptive-avg-pool matrix (cols sum a bin mean)
    wfc_ref: (Cmid*64, out)   VMEM  FC weight, rows in PyTorch flatten order c*64+pd*16+q
    bfc_ref: (1, out)         VMEM  FC bias
    o_ref:   (1, 1, out)      VMEM  output logits for this batch element
    """
    _, Cin, D, HW = x_ref.shape
    Cmid = w1_ref.shape[0]

    # PyTorch adaptive-pool bin bounds along D (integer arithmetic, exact).
    d_bins = [((pd * D) // 4, ((pd + 1) * D + 3) // 4) for pd in range(4)]

    x3 = x_ref[0]            # (Cin, D, HW) -- loaded once, reused for every output channel
    phw = phw_ref[...]       # (HW, 16)

    acc = bfc_ref[...]       # (1, out) -- start from the FC bias
    for c in range(Cmid):
        # --- 1x1x1 conv, output channel c: VPU broadcast-MAC over the tiny Cin contraction
        yc = x3[0] * w1_ref[c, 0]
        for k in range(1, Cin):
            yc = yc + x3[k] * w1_ref[c, k]
        yc = yc + b1_ref[c]                              # (D, HW)

        # --- InstanceNorm3d (biased variance over all spatial positions, no affine) + ReLU
        mu = jnp.mean(yc)
        var = jnp.mean((yc - mu) * (yc - mu))
        yc = jnp.maximum((yc - mu) * jax.lax.rsqrt(var + EPS), 0.0)

        # --- adaptive avg pool over (h, w): (D, HW) @ (HW, 16) -> (D, 16)
        zc = jnp.dot(yc, phw, preferred_element_type=jnp.float32)

        # --- adaptive avg pool over d (static sublane slices) + fused FC contribution
        for pd, (d0, d1) in enumerate(d_bins):
            pooled = jnp.mean(zc[d0:d1, :], axis=0, keepdims=True)      # (1, 16)
            row0 = (c * 4 + pd) * 16                                    # f = c*64 + pd*16 + q
            acc = acc + jnp.dot(pooled, wfc_ref[row0:row0 + 16, :],
                                preferred_element_type=jnp.float32)     # (1, out)

    o_ref[0] = acc.astype(o_ref.dtype)


# ---------------------------------------------------------------------------
# One-time weight preparation (outside the per-call path)
# ---------------------------------------------------------------------------
def _pool_bounds(L, o):
    """PyTorch adaptive pooling bin bounds, integer arithmetic (exact for any L)."""
    return [((i * L) // o, ((i + 1) * L + o - 1) // o) for i in range(o)]


def adaptive_pool_hw_matrix(H, W, oh=4, ow=4):
    """(H*W, oh*ow) matrix whose column (ph*ow+pw) averages the (ph, pw) bin."""
    P = np.zeros((H * W, oh * ow), dtype=np.float32)
    for ph, (h0, h1) in enumerate(_pool_bounds(H, oh)):
        for pw, (w0, w1) in enumerate(_pool_bounds(W, ow)):
            cnt = (h1 - h0) * (w1 - w0)
            for h in range(h0, h1):
                for w in range(w0, w1):
                    P[h * W + w, ph * ow + pw] = 1.0 / cnt
    return jnp.asarray(P)


def prepare_params(conv_w, conv_b, fc_w, fc_b, H, W):
    """conv_w: (Cmid, Cin, 1,1,1); conv_b: (Cmid,); fc_w: (out, Cmid*64); fc_b: (out,)."""
    Cmid, Cin = conv_w.shape[0], conv_w.shape[1]
    out_size = fc_w.shape[0]
    w1 = jnp.asarray(conv_w, jnp.float32).reshape(Cmid, Cin)      # (Cmid, Cin) scalars
    b1 = jnp.asarray(conv_b, jnp.float32).reshape(Cmid)           # (Cmid,)
    phw = adaptive_pool_hw_matrix(H, W)                           # (H*W, 16)
    wfc = jnp.asarray(fc_w, jnp.float32).T                        # (Cmid*64, out)
    bfc = jnp.asarray(fc_b, jnp.float32).reshape(1, out_size)     # (1, out)
    return w1, b1, phw, wfc, bfc


# ---------------------------------------------------------------------------
# Forward (jitted): metadata reshape + one pallas_call
# ---------------------------------------------------------------------------
@jax.jit
def gating_forward(x_ncdhw, w1, b1, phw, wfc, bfc):
    N, Cin, D, H, W = x_ncdhw.shape
    Cmid = w1.shape[0]
    out_size = wfc.shape[1]
    HW = H * W

    # Pure metadata reshape -- no HBM transpose.
    x4 = x_ncdhw.reshape(N, Cin, D, HW).astype(jnp.float32)

    out3 = pl.pallas_call(
        gating_fused_kernel,
        out_shape=jax.ShapeDtypeStruct((N, 1, out_size), jnp.float32),
        grid=(N,),
        in_specs=[
            pl.BlockSpec((1, Cin, D, HW), lambda n: (n, 0, 0, 0)),
            pl.BlockSpec(memory_space=pltpu.MemorySpace.SMEM),    # conv weight scalars
            pl.BlockSpec(memory_space=pltpu.MemorySpace.SMEM),    # conv bias scalars
            pl.BlockSpec((HW, 16), lambda n: (0, 0)),             # (h, w) pool matrix
            pl.BlockSpec((Cmid * 64, out_size), lambda n: (0, 0)),  # FC weight
            pl.BlockSpec((1, out_size), lambda n: (0, 0)),        # FC bias
        ],
        out_specs=pl.BlockSpec((1, 1, out_size), lambda n: (n, 0, 0)),
        compiler_params=pltpu.CompilerParams(
            dimension_semantics=("parallel",),
            vmem_limit_bytes=32 * 1024 * 1024,
        ),
    )(x4, w1, b1, phw, wfc, bfc)

    return out3.reshape(N, out_size)


# ---------------------------------------------------------------------------
# Pure-JAX reference (semantics check)
# ---------------------------------------------------------------------------
def reference(x, conv_w, conv_b, fc_w, fc_b):
    N, Cin, D, H, W = x.shape
    Cmid = conv_w.shape[0]
    y = jnp.einsum("ncdhw,mc->nmdhw", x, conv_w.reshape(Cmid, Cin)) \
        + conv_b[None, :, None, None, None]
    mean = jnp.mean(y, axis=(2, 3, 4), keepdims=True)
    var = jnp.mean((y - mean) ** 2, axis=(2, 3, 4), keepdims=True)
    y = (y - mean) / jnp.sqrt(var + EPS)
    y = jnp.maximum(y, 0.0)
    # D, H, W divisible by 4 in the demo -> uniform blocks == adaptive pooling
    y = y.reshape(N, Cmid, 4, D // 4, 4, H // 4, 4, W // 4).mean(axis=(3, 5, 7))
    feat = y.reshape(N, -1)
    return feat @ fc_w.T + fc_b


# ---------------------------------------------------------------------------
if __name__ == "__main__":
    # Small shapes consistent with the module: in_size=8 -> mid=4, out_size=16
    N, Cin, D, H, W = 2, 8, 8, 8, 8
    Cmid = Cin // 2
    out_size = 16
    F = Cmid * 64

    key = jax.random.PRNGKey(0)
    kx, kw1, kb1, kw2, kb2 = jax.random.split(key, 5)

    x = jax.random.normal(kx, (N, Cin, D, H, W), dtype=jnp.float32)
    conv_w = jax.random.normal(kw1, (Cmid, Cin, 1, 1, 1), dtype=jnp.float32) * np.sqrt(2.0 / Cin)
    conv_b = jax.random.normal(kb1, (Cmid,), dtype=jnp.float32) * 0.01
    fc_w = jax.random.normal(kw2, (out_size, F), dtype=jnp.float32) * np.sqrt(2.0 / F)
    fc_b = jax.random.normal(kb2, (out_size,), dtype=jnp.float32) * 0.01

    params = prepare_params(conv_w, conv_b, fc_w, fc_b, H, W)   # one-time weight prep
    out = jax.block_until_ready(gating_forward(x, *params))

    ref = reference(x, conv_w, conv_b, fc_w, fc_b)
    np.testing.assert_allclose(np.asarray(out), np.asarray(ref), rtol=1e-4, atol=1e-4)

    print("KERNEL_OK")
</pallas_src>

<mosaic_0001>
module attributes {stable_mosaic.version = 11 : i64} {
  func.func @gating_fused_kernel(%arg0: i32, %arg1: memref<1x8x8x64xf32, #tpu.memory_space<vmem>>, %arg2: memref<4x8xf32, #tpu.memory_space<smem>>, %arg3: memref<4xf32, #tpu.memory_space<smem>>, %arg4: memref<64x16xf32, #tpu.memory_space<vmem>>, %arg5: memref<256x16xf32, #tpu.memory_space<vmem>>, %arg6: memref<1x16xf32, #tpu.memory_space<vmem>>, %arg7: memref<1x1x16xf32, #tpu.memory_space<vmem>>) attributes {dimension_semantics = [#tpu.dimension_semantics<parallel>], iteration_bounds = array<i64: 2>, scalar_prefetch = 0 : i64, scratch_operands = 0 : i64, tpu.core_type = #tpu.core_type<tc>, window_params = [{transform_indices = @transform_0, window_bounds = array<i64: 1, 8, 8, 64>}, {transform_indices = @transform_1, window_bounds = array<i64: 4, 8>}, {transform_indices = @transform_2, window_bounds = array<i64: 4>}, {pipeline_mode = #tpu.pipeline_mode<synchronous>, transform_indices = @transform_3, window_bounds = array<i64: 64, 16>}, {pipeline_mode = #tpu.pipeline_mode<synchronous>, transform_indices = @transform_4, window_bounds = array<i64: 256, 16>}, {pipeline_mode = #tpu.pipeline_mode<synchronous>, transform_indices = @transform_5, window_bounds = array<i64: 1, 16>}, {transform_indices = @transform_6, window_bounds = array<i64: 1, 1, 16>}]} {
    %c0 = arith.constant 0 : index
    %c0_0 = arith.constant 0 : index
    %c0_1 = arith.constant 0 : index
    %c0_2 = arith.constant 0 : index
    %0 = vector.load %arg1[%c0, %c0_0, %c0_1, %c0_2] : memref<1x8x8x64xf32, #tpu.memory_space<vmem>>, vector<1x8x8x64xf32>
    %1 = vector.shape_cast %0 : vector<1x8x8x64xf32> to vector<8x8x64xf32>
    %c0_3 = arith.constant 0 : index
    %c0_4 = arith.constant 0 : index
    %2 = vector.load %arg4[%c0_3, %c0_4] : memref<64x16xf32, #tpu.memory_space<vmem>>, vector<64x16xf32>
    %c0_5 = arith.constant 0 : index
    %c0_6 = arith.constant 0 : index
    %3 = vector.load %arg6[%c0_5, %c0_6] : memref<1x16xf32, #tpu.memory_space<vmem>>, vector<1x16xf32>
    %4 = vector.extract_strided_slice %1 {offsets = [0, 0, 0], sizes = [1, 8, 64], strides = [1, 1, 1]} : vector<8x8x64xf32> to vector<1x8x64xf32>
    %5 = vector.shape_cast %4 : vector<1x8x64xf32> to vector<8x64xf32>
    %c0_7 = arith.constant 0 : index
    %c0_8 = arith.constant 0 : index
    %6 = memref.load %arg2[%c0_7, %c0_8] : memref<4x8xf32, #tpu.memory_space<smem>>
    %7 = vector.broadcast %6 : f32 to vector<8x64xf32>
    %8 = arith.mulf %5, %7 : vector<8x64xf32>
    %9 = vector.extract_strided_slice %1 {offsets = [1, 0, 0], sizes = [1, 8, 64], strides = [1, 1, 1]} : vector<8x8x64xf32> to vector<1x8x64xf32>
    %10 = vector.shape_cast %9 : vector<1x8x64xf32> to vector<8x64xf32>
    %c0_9 = arith.constant 0 : index
    %c1 = arith.constant 1 : index
    %11 = memref.load %arg2[%c0_9, %c1] : memref<4x8xf32, #tpu.memory_space<smem>>
    %12 = vector.broadcast %11 : f32 to vector<8x64xf32>
    %13 = arith.mulf %10, %12 : vector<8x64xf32>
    %14 = arith.addf %8, %13 : vector<8x64xf32>
    %15 = vector.extract_strided_slice %1 {offsets = [2, 0, 0], sizes = [1, 8, 64], strides = [1, 1, 1]} : vector<8x8x64xf32> to vector<1x8x64xf32>
    %16 = vector.shape_cast %15 : vector<1x8x64xf32> to vector<8x64xf32>
    %c0_10 = arith.constant 0 : index
    %c2 = arith.constant 2 : index
    %17 = memref.load %arg2[%c0_10, %c2] : memref<4x8xf32, #tpu.memory_space<smem>>
    %18 = vector.broadcast %17 : f32 to vector<8x64xf32>
    %19 = arith.mulf %16, %18 : vector<8x64xf32>
    %20 = arith.addf %14, %19 : vector<8x64xf32>
    %21 = vector.extract_strided_slice %1 {offsets = [3, 0, 0], sizes = [1, 8, 64], strides = [1, 1, 1]} : vector<8x8x64xf32> to vector<1x8x64xf32>
    %22 = vector.shape_cast %21 : vector<1x8x64xf32> to vector<8x64xf32>
    %c0_11 = arith.constant 0 : index
    %c3 = arith.constant 3 : index
    %23 = memref.load %arg2[%c0_11, %c3] : memref<4x8xf32, #tpu.memory_space<smem>>
    %24 = vector.broadcast %23 : f32 to vector<8x64xf32>
    %25 = arith.mulf %22, %24 : vector<8x64xf32>
    %26 = arith.addf %20, %25 : vector<8x64xf32>
    %27 = vector.extract_strided_slice %1 {offsets = [4, 0, 0], sizes = [1, 8, 64], strides = [1, 1, 1]} : vector<8x8x64xf32> to vector<1x8x64xf32>
    %28 = vector.shape_cast %27 : vector<1x8x64xf32> to vector<8x64xf32>
    %c0_12 = arith.constant 0 : index
    %c4 = arith.constant 4 : index
    %29 = memref.load %arg2[%c0_12, %c4] : memref<4x8xf32, #tpu.memory_space<smem>>
    %30 = vector.broadcast %29 : f32 to vector<8x64xf32>
    %31 = arith.mulf %28, %30 : vector<8x64xf32>
    %32 = arith.addf %26, %31 : vector<8x64xf32>
    %33 = vector.extract_strided_slice %1 {offsets = [5, 0, 0], sizes = [1, 8, 64], strides = [1, 1, 1]} : vector<8x8x64xf32> to vector<1x8x64xf32>
    %34 = vector.shape_cast %33 : vector<1x8x64xf32> to vector<8x64xf32>
    %c0_13 = arith.constant 0 : index
    %c5 = arith.constant 5 : index
    %35 = memref.load %arg2[%c0_13, %c5] : memref<4x8xf32, #tpu.memory_space<smem>>
    %36 = vector.broadcast %35 : f32 to vector<8x64xf32>
    %37 = arith.mulf %34, %36 : vector<8x64xf32>
    %38 = arith.addf %32, %37 : vector<8x64xf32>
    %39 = vector.extract_strided_slice %1 {offsets = [6, 0, 0], sizes = [1, 8, 64], strides = [1, 1, 1]} : vector<8x8x64xf32> to vector<1x8x64xf32>
    %40 = vector.shape_cast %39 : vector<1x8x64xf32> to vector<8x64xf32>
    %c0_14 = arith.constant 0 : index
    %c6 = arith.constant 6 : index
    %41 = memref.load %arg2[%c0_14, %c6] : memref<4x8xf32, #tpu.memory_space<smem>>
    %42 = vector.broadcast %41 : f32 to vector<8x64xf32>
    %43 = arith.mulf %40, %42 : vector<8x64xf32>
    %44 = arith.addf %38, %43 : vector<8x64xf32>
    %45 = vector.extract_strided_slice %1 {offsets = [7, 0, 0], sizes = [1, 8, 64], strides = [1, 1, 1]} : vector<8x8x64xf32> to vector<1x8x64xf32>
    %46 = vector.shape_cast %45 : vector<1x8x64xf32> to vector<8x64xf32>
    %c0_15 = arith.constant 0 : index
    %c7 = arith.constant 7 : index
    %47 = memref.load %arg2[%c0_15, %c7] : memref<4x8xf32, #tpu.memory_space<smem>>
    %48 = vector.broadcast %47 : f32 to vector<8x64xf32>
    %49 = arith.mulf %46, %48 : vector<8x64xf32>
    %50 = arith.addf %44, %49 : vector<8x64xf32>
    %c0_16 = arith.constant 0 : index
    %51 = memref.load %arg3[%c0_16] : memref<4xf32, #tpu.memory_space<smem>>
    %52 = vector.broadcast %51 : f32 to vector<8x64xf32>
    %53 = arith.addf %50, %52 : vector<8x64xf32>
    %54 = vector.shape_cast %53 : vector<8x64xf32> to vector<1x8x64xf32>
    %cst = arith.constant dense<0.000000e+00> : vector<1xf32>
    %55 = vector.multi_reduction <add>, %54, %cst [1, 2] : vector<1x8x64xf32> to vector<1xf32>
    %56 = vector.shape_cast %55 : vector<1xf32> to vector<1x1x1xf32>
    %57 = vector.extract %56[0, 0, 0] : f32 from vector<1x1x1xf32>
    %cst_17 = arith.constant 5.120000e+02 : f32
    %58 = arith.divf %57, %cst_17 : f32
    %59 = vector.broadcast %58 : f32 to vector<8x64xf32>
    %60 = arith.subf %53, %59 : vector<8x64xf32>
    %61 = vector.broadcast %58 : f32 to vector<8x64xf32>
    %62 = arith.subf %53, %61 : vector<8x64xf32>
    %63 = arith.mulf %60, %62 : vector<8x64xf32>
    %64 = vector.shape_cast %63 : vector<8x64xf32> to vector<1x8x64xf32>
    %cst_18 = arith.constant dense<0.000000e+00> : vector<1xf32>
    %65 = vector.multi_reduction <add>, %64, %cst_18 [1, 2] : vector<1x8x64xf32> to vector<1xf32>
    %66 = vector.shape_cast %65 : vector<1xf32> to vector<1x1x1xf32>
    %67 = vector.extract %66[0, 0, 0] : f32 from vector<1x1x1xf32>
    %cst_19 = arith.constant 5.120000e+02 : f32
    %68 = arith.divf %67, %cst_19 : f32
    %69 = vector.broadcast %58 : f32 to vector<8x64xf32>
    %70 = arith.subf %53, %69 : vector<8x64xf32>
    %cst_20 = arith.constant 9.99999974E-6 : f32
    %71 = arith.addf %68, %cst_20 : f32
    %72 = math.rsqrt %71 : f32
    %73 = vector.broadcast %72 : f32 to vector<8x64xf32>
    %74 = arith.mulf %70, %73 : vector<8x64xf32>
    %cst_21 = arith.constant 0.000000e+00 : f32
    %75 = vector.broadcast %cst_21 : f32 to vector<8x64xf32>
    %76 = arith.maximumf %74, %75 : vector<8x64xf32>
    %cst_22 = arith.constant dense<0.000000e+00> : vector<8x16xf32>
    %77 = tpu.matmul %76, %2, %cst_22 {dimension_numbers = #tpu.dot_dimension_numbers<[1], [0], [0], [1], [0, 0, 1, 1], [], []>} : vector<8x64xf32>, vector<64x16xf32>, vector<8x16xf32> -> vector<8x16xf32>
    %78 = vector.extract_strided_slice %77 {offsets = [0, 0], sizes = [2, 16], strides = [1, 1]} : vector<8x16xf32> to vector<2x16xf32>
    %cst_23 = arith.constant dense<0.000000e+00> : vector<16xf32>
    %79 = vector.multi_reduction <add>, %78, %cst_23 [0] : vector<2x16xf32> to vector<16xf32>
    %80 = vector.shape_cast %79 : vector<16xf32> to vector<1x16xf32>
    %cst_24 = arith.constant 2.000000e+00 : f32
    %81 = vector.broadcast %cst_24 : f32 to vector<1x16xf32>
    %82 = arith.divf %80, %81 : vector<1x16xf32>
    %c0_25 = arith.constant 0 : index
    %c0_26 = arith.constant 0 : index
    %83 = vector.load %arg5[%c0_25, %c0_26] : memref<256x16xf32, #tpu.memory_space<vmem>>, vector<16x16xf32>
    %cst_27 = arith.constant dense<0.000000e+00> : vector<1x16xf32>
    %84 = tpu.matmul %82, %83, %cst_27 {dimension_numbers = #tpu.dot_dimension_numbers<[1], [0], [0], [1], [0, 0, 1, 1], [], []>} : vector<1x16xf32>, vector<16x16xf32>, vector<1x16xf32> -> vector<1x16xf32>
    %85 = arith.addf %3, %84 : vector<1x16xf32>
    %86 = vector.extract_strided_slice %77 {offsets = [2, 0], sizes = [2, 16], strides = [1, 1]} : vector<8x16xf32> to vector<2x16xf32>
    %cst_28 = arith.constant dense<0.000000e+00> : vector<16xf32>
    %87 = vector.multi_reduction <add>, %86, %cst_28 [0] : vector<2x16xf32> to vector<16xf32>
    %88 = vector.shape_cast %87 : vector<16xf32> to vector<1x16xf32>
    %cst_29 = arith.constant 2.000000e+00 : f32
    %89 = vector.broadcast %cst_29 : f32 to vector<1x16xf32>
    %90 = arith.divf %88, %89 : vector<1x16xf32>
    %c16 = arith.constant 16 : index
    %c0_30 = arith.constant 0 : index
    %91 = vector.load %arg5[%c16, %c0_30] : memref<256x16xf32, #tpu.memory_space<vmem>>, vector<16x16xf32>
    %cst_31 = arith.constant dense<0.000000e+00> : vector<1x16xf32>
    %92 = tpu.matmul %90, %91, %cst_31 {dimension_numbers = #tpu.dot_dimension_numbers<[1], [0], [0], [1], [0, 0, 1, 1], [], []>} : vector<1x16xf32>, vector<16x16xf32>, vector<1x16xf32> -> vector<1x16xf32>
    %93 = arith.addf %85, %92 : vector<1x16xf32>
    %94 = vector.extract_strided_slice %77 {offsets = [4, 0], sizes = [2, 16], strides = [1, 1]} : vector<8x16xf32> to vector<2x16xf32>
    %cst_32 = arith.constant dense<0.000000e+00> : vector<16xf32>
    %95 = vector.multi_reduction <add>, %94, %cst_32 [0] : vector<2x16xf32> to vector<16xf32>
    %96 = vector.shape_cast %95 : vector<16xf32> to vector<1x16xf32>
    %cst_33 = arith.constant 2.000000e+00 : f32
    %97 = vector.broadcast %cst_33 : f32 to vector<1x16xf32>
    %98 = arith.divf %96, %97 : vector<1x16xf32>
    %c32 = arith.constant 32 : index
    %c0_34 = arith.constant 0 : index
    %99 = vector.load %arg5[%c32, %c0_34] : memref<256x16xf32, #tpu.memory_space<vmem>>, vector<16x16xf32>
    %cst_35 = arith.constant dense<0.000000e+00> : vector<1x16xf32>
    %100 = tpu.matmul %98, %99, %cst_35 {dimension_numbers = #tpu.dot_dimension_numbers<[1], [0], [0], [1], [0, 0, 1, 1], [], []>} : vector<1x16xf32>, vector<16x16xf32>, vector<1x16xf32> -> vector<1x16xf32>
    %101 = arith.addf %93, %100 : vector<1x16xf32>
    %102 = vector.extract_strided_slice %77 {offsets = [6, 0], sizes = [2, 16], strides = [1, 1]} : vector<8x16xf32> to vector<2x16xf32>
    %cst_36 = arith.constant dense<0.000000e+00> : vector<16xf32>
    %103 = vector.multi_reduction <add>, %102, %cst_36 [0] : vector<2x16xf32> to vector<16xf32>
    %104 = vector.shape_cast %103 : vector<16xf32> to vector<1x16xf32>
    %cst_37 = arith.constant 2.000000e+00 : f32
    %105 = vector.broadcast %cst_37 : f32 to vector<1x16xf32>
    %106 = arith.divf %104, %105 : vector<1x16xf32>
    %c48 = arith.constant 48 : index
    %c0_38 = arith.constant 0 : index
    %107 = vector.load %arg5[%c48, %c0_38] : memref<256x16xf32, #tpu.memory_space<vmem>>, vector<16x16xf32>
    %cst_39 = arith.constant dense<0.000000e+00> : vector<1x16xf32>
    %108 = tpu.matmul %106, %107, %cst_39 {dimension_numbers = #tpu.dot_dimension_numbers<[1], [0], [0], [1], [0, 0, 1, 1], [], []>} : vector<1x16xf32>, vector<16x16xf32>, vector<1x16xf32> -> vector<1x16xf32>
    %109 = arith.addf %101, %108 : vector<1x16xf32>
    %110 = vector.extract_strided_slice %1 {offsets = [0, 0, 0], sizes = [1, 8, 64], strides = [1, 1, 1]} : vector<8x8x64xf32> to vector<1x8x64xf32>
    %111 = vector.shape_cast %110 : vector<1x8x64xf32> to vector<8x64xf32>
    %c1_40 = arith.constant 1 : index
    %c0_41 = arith.constant 0 : index
    %112 = memref.load %arg2[%c1_40, %c0_41] : memref<4x8xf32, #tpu.memory_space<smem>>
    %113 = vector.broadcast %112 : f32 to vector<8x64xf32>
    %114 = arith.mulf %111, %113 : vector<8x64xf32>
    %115 = vector.extract_strided_slice %1 {offsets = [1, 0, 0], sizes = [1, 8, 64], strides = [1, 1, 1]} : vector<8x8x64xf32> to vector<1x8x64xf32>
    %116 = vector.shape_cast %115 : vector<1x8x64xf32> to vector<8x64xf32>
    %c1_42 = arith.constant 1 : index
    %c1_43 = arith.constant 1 : index
    %117 = memref.load %arg2[%c1_42, %c1_43] : memref<4x8xf32, #tpu.memory_space<smem>>
    %118 = vector.broadcast %117 : f32 to vector<8x64xf32>
    %119 = arith.mulf %116, %118 : vector<8x64xf32>
    %120 = arith.addf %114, %119 : vector<8x64xf32>
    %121 = vector.extract_strided_slice %1 {offsets = [2, 0, 0], sizes = [1, 8, 64], strides = [1, 1, 1]} : vector<8x8x64xf32> to vector<1x8x64xf32>
    %122 = vector.shape_cast %121 : vector<1x8x64xf32> to vector<8x64xf32>
    %c1_44 = arith.constant 1 : index
    %c2_45 = arith.constant 2 : index
    %123 = memref.load %arg2[%c1_44, %c2_45] : memref<4x8xf32, #tpu.memory_space<smem>>
    %124 = vector.broadcast %123 : f32 to vector<8x64xf32>
    %125 = arith.mulf %122, %124 : vector<8x64xf32>
    %126 = arith.addf %120, %125 : vector<8x64xf32>
    %127 = vector.extract_strided_slice %1 {offsets = [3, 0, 0], sizes = [1, 8, 64], strides = [1, 1, 1]} : vector<8x8x64xf32> to vector<1x8x64xf32>
    %128 = vector.shape_cast %127 : vector<1x8x64xf32> to vector<8x64xf32>
    %c1_46 = arith.constant 1 : index
    %c3_47 = arith.constant 3 : index
    %129 = memref.load %arg2[%c1_46, %c3_47] : memref<4x8xf32, #tpu.memory_space<smem>>
    %130 = vector.broadcast %129 : f32 to vector<8x64xf32>
    %131 = arith.mulf %128, %130 : vector<8x64xf32>
    %132 = arith.addf %126, %131 : vector<8x64xf32>
    %133 = vector.extract_strided_slice %1 {offsets = [4, 0, 0], sizes = [1, 8, 64], strides = [1, 1, 1]} : vector<8x8x64xf32> to vector<1x8x64xf32>
    %134 = vector.shape_cast %133 : vector<1x8x64xf32> to vector<8x64xf32>
    %c1_48 = arith.constant 1 : index
    %c4_49 = arith.constant 4 : index
    %135 = memref.load %arg2[%c1_48, %c4_49] : memref<4x8xf32, #tpu.memory_space<smem>>
    %136 = vector.broadcast %135 : f32 to vector<8x64xf32>
    %137 = arith.mulf %134, %136 : vector<8x64xf32>
    %138 = arith.addf %132, %137 : vector<8x64xf32>
    %139 = vector.extract_strided_slice %1 {offsets = [5, 0, 0], sizes = [1, 8, 64], strides = [1, 1, 1]} : vector<8x8x64xf32> to vector<1x8x64xf32>
    %140 = vector.shape_cast %139 : vector<1x8x64xf32> to vector<8x64xf32>
    %c1_50 = arith.constant 1 : index
    %c5_51 = arith.constant 5 : index
    %141 = memref.load %arg2[%c1_50, %c5_51] : memref<4x8xf32, #tpu.memory_space<smem>>
    %142 = vector.broadcast %141 : f32 to vector<8x64xf32>
    %143 = arith.mulf %140, %142 : vector<8x64xf32>
    %144 = arith.addf %138, %143 : vector<8x64xf32>
    %145 = vector.extract_strided_slice %1 {offsets = [6, 0, 0], sizes = [1, 8, 64], strides = [1, 1, 1]} : vector<8x8x64xf32> to vector<1x8x64xf32>
    %146 = vector.shape_cast %145 : vector<1x8x64xf32> to vector<8x64xf32>
    %c1_52 = arith.constant 1 : index
    %c6_53 = arith.constant 6 : index
    %147 = memref.load %arg2[%c1_52, %c6_53] : memref<4x8xf32, #tpu.memory_space<smem>>
    %148 = vector.broadcast %147 : f32 to vector<8x64xf32>
    %149 = arith.mulf %146, %148 : vector<8x64xf32>
    %150 = arith.addf %144, %149 : vector<8x64xf32>
    %151 = vector.extract_strided_slice %1 {offsets = [7, 0, 0], sizes = [1, 8, 64], strides = [1, 1, 1]} : vector<8x8x64xf32> to vector<1x8x64xf32>
    %152 = vector.shape_cast %151 : vector<1x8x64xf32> to vector<8x64xf32>
    %c1_54 = arith.constant 1 : index
    %c7_55 = arith.constant 7 : index
    %153 = memref.load %arg2[%c1_54, %c7_55] : memref<4x8xf32, #tpu.memory_space<smem>>
    %154 = vector.broadcast %153 : f32 to vector<8x64xf32>
    %155 = arith.mulf %152, %154 : vector<8x64xf32>
    %156 = arith.addf %150, %155 : vector<8x64xf32>
    %c1_56 = arith.constant 1 : index
    %157 = memref.load %arg3[%c1_56] : memref<4xf32, #tpu.memory_space<smem>>
    %158 = vector.broadcast %157 : f32 to vector<8x64xf32>
    %159 = arith.addf %156, %158 : vector<8x64xf32>
    %160 = vector.shape_cast %159 : vector<8x64xf32> to vector<1x8x64xf32>
    %cst_57 = arith.constant dense<0.000000e+00> : vector<1xf32>
    %161 = vector.multi_reduction <add>, %160, %cst_57 [1, 2] : vector<1x8x64xf32> to vector<1xf32>
    %162 = vector.shape_cast %161 : vector<1xf32> to vector<1x1x1xf32>
    %163 = vector.extract %162[0, 0, 0] : f32 from vector<1x1x1xf32>
    %cst_58 = arith.constant 5.120000e+02 : f32
    %164 = arith.divf %163, %cst_58 : f32
    %165 = vector.broadcast %164 : f32 to vector<8x64xf32>
    %166 = arith.subf %159, %165 : vector<8x64xf32>
    %167 = vector.broadcast %164 : f32 to vector<8x64xf32>
    %168 = arith.subf %159, %167 : vector<8x64xf32>
    %169 = arith.mulf %166, %168 : vector<8x64xf32>
    %170 = vector.shape_cast %169 : vector<8x64xf32> to vector<1x8x64xf32>
    %cst_59 = arith.constant dense<0.000000e+00> : vector<1xf32>
    %171 = vector.multi_reduction <add>, %170, %cst_59 [1, 2] : vector<1x8x64xf32> to vector<1xf32>
    %172 = vector.shape_cast %171 : vector<1xf32> to vector<1x1x1xf32>
    %173 = vector.extract %172[0, 0, 0] : f32 from vector<1x1x1xf32>
    %cst_60 = arith.constant 5.120000e+02 : f32
    %174 = arith.divf %173, %cst_60 : f32
    %175 = vector.broadcast %164 : f32 to vector<8x64xf32>
    %176 = arith.subf %159, %175 : vector<8x64xf32>
    %cst_61 = arith.constant 9.99999974E-6 : f32
    %177 = arith.addf %174, %cst_61 : f32
    %178 = math.rsqrt %177 : f32
    %179 = vector.broadcast %178 : f32 to vector<8x64xf32>
    %180 = arith.mulf %176, %179 : vector<8x64xf32>
    %cst_62 = arith.constant 0.000000e+00 : f32
    %181 = vector.broadcast %cst_62 : f32 to vector<8x64xf32>
    %182 = arith.maximumf %180, %181 : vector<8x64xf32>
    %cst_63 = arith.constant dense<0.000000e+00> : vector<8x16xf32>
    %183 = tpu.matmul %182, %2, %cst_63 {dimension_numbers = #tpu.dot_dimension_numbers<[1], [0], [0], [1], [0, 0, 1, 1], [], []>} : vector<8x64xf32>, vector<64x16xf32>, vector<8x16xf32> -> vector<8x16xf32>
    %184 = vector.extract_strided_slice %183 {offsets = [0, 0], sizes = [2, 16], strides = [1, 1]} : vector<8x16xf32> to vector<2x16xf32>
    %cst_64 = arith.constant dense<0.000000e+00> : vector<16xf32>
    %185 = vector.multi_reduction <add>, %184, %cst_64 [0] : vector<2x16xf32> to vector<16xf32>
    %186 = vector.shape_cast %185 : vector<16xf32> to vector<1x16xf32>
    %cst_65 = arith.constant 2.000000e+00 : f32
    %187 = vector.broadcast %cst_65 : f32 to vector<1x16xf32>
    %188 = arith.divf %186, %187 : vector<1x16xf32>
    %c64 = arith.constant 64 : index
    %c0_66 = arith.constant 0 : index
    %189 = vector.load %arg5[%c64, %c0_66] : memref<256x16xf32, #tpu.memory_space<vmem>>, vector<16x16xf32>
    %cst_67 = arith.constant dense<0.000000e+00> : vector<1x16xf32>
    %190 = tpu.matmul %188, %189, %cst_67 {dimension_numbers = #tpu.dot_dimension_numbers<[1], [0], [0], [1], [0, 0, 1, 1], [], []>} : vector<1x16xf32>, vector<16x16xf32>, vector<1x16xf32> -> vector<1x16xf32>
    %191 = arith.addf %109, %190 : vector<1x16xf32>
    %192 = vector.extract_strided_slice %183 {offsets = [2, 0], sizes = [2, 16], strides = [1, 1]} : vector<8x16xf32> to vector<2x16xf32>
    %cst_68 = arith.constant dense<0.000000e+00> : vector<16xf32>
    %193 = vector.multi_reduction <add>, %192, %cst_68 [0] : vector<2x16xf32> to vector<16xf32>
    %194 = vector.shape_cast %193 : vector<16xf32> to vector<1x16xf32>
    %cst_69 = arith.constant 2.000000e+00 : f32
    %195 = vector.broadcast %cst_69 : f32 to vector<1x16xf32>
    %196 = arith.divf %194, %195 : vector<1x16xf32>
    %c80 = arith.constant 80 : index
    %c0_70 = arith.constant 0 : index
    %197 = vector.load %arg5[%c80, %c0_70] : memref<256x16xf32, #tpu.memory_space<vmem>>, vector<16x16xf32>
    %cst_71 = arith.constant dense<0.000000e+00> : vector<1x16xf32>
    %198 = tpu.matmul %196, %197, %cst_71 {dimension_numbers = #tpu.dot_dimension_numbers<[1], [0], [0], [1], [0, 0, 1, 1], [], []>} : vector<1x16xf32>, vector<16x16xf32>, vector<1x16xf32> -> vector<1x16xf32>
    %199 = arith.addf %191, %198 : vector<1x16xf32>
    %200 = vector.extract_strided_slice %183 {offsets = [4, 0], sizes = [2, 16], strides = [1, 1]} : vector<8x16xf32> to vector<2x16xf32>
    %cst_72 = arith.constant dense<0.000000e+00> : vector<16xf32>
    %201 = vector.multi_reduction <add>, %200, %cst_72 [0] : vector<2x16xf32> to vector<16xf32>
    %202 = vector.shape_cast %201 : vector<16xf32> to vector<1x16xf32>
    %cst_73 = arith.constant 2.000000e+00 : f32
    %203 = vector.broadcast %cst_73 : f32 to vector<1x16xf32>
    %204 = arith.divf %202, %203 : vector<1x16xf32>
    %c96 = arith.constant 96 : index
    %c0_74 = arith.constant 0 : index
    %205 = vector.load %arg5[%c96, %c0_74] : memref<256x16xf32, #tpu.memory_space<vmem>>, vector<16x16xf32>
    %cst_75 = arith.constant dense<0.000000e+00> : vector<1x16xf32>
    %206 = tpu.matmul %204, %205, %cst_75 {dimension_numbers = #tpu.dot_dimension_numbers<[1], [0], [0], [1], [0, 0, 1, 1], [], []>} : vector<1x16xf32>, vector<16x16xf32>, vector<1x16xf32> -> vector<1x16xf32>
    %207 = arith.addf %199, %206 : vector<1x16xf32>
    %208 = vector.extract_strided_slice %183 {offsets = [6, 0], sizes = [2, 16], strides = [1, 1]} : vector<8x16xf32> to vector<2x16xf32>
    %cst_76 = arith.constant dense<0.000000e+00> : vector<16xf32>
    %209 = vector.multi_reduction <add>, %208, %cst_76 [0] : vector<2x16xf32> to vector<16xf32>
    %210 = vector.shape_cast %209 : vector<16xf32> to vector<1x16xf32>
    %cst_77 = arith.constant 2.000000e+00 : f32
    %211 = vector.broadcast %cst_77 : f32 to vector<1x16xf32>
    %212 = arith.divf %210, %211 : vector<1x16xf32>
    %c112 = arith.constant 112 : index
    %c0_78 = arith.constant 0 : index
    %213 = vector.load %arg5[%c112, %c0_78] : memref<256x16xf32, #tpu.memory_space<vmem>>, vector<16x16xf32>
    %cst_79 = arith.constant dense<0.000000e+00> : vector<1x16xf32>
    %214 = tpu.matmul %212, %213, %cst_79 {dimension_numbers = #tpu.dot_dimension_numbers<[1], [0], [0], [1], [0, 0, 1, 1], [], []>} : vector<1x16xf32>, vector<16x16xf32>, vector<1x16xf32> -> vector<1x16xf32>
    %215 = arith.addf %207, %214 : vector<1x16xf32>
    %216 = vector.extract_strided_slice %1 {offsets = [0, 0, 0], sizes = [1, 8, 64], strides = [1, 1, 1]} : vector<8x8x64xf32> to vector<1x8x64xf32>
    %217 = vector.shape_cast %216 : vector<1x8x64xf32> to vector<8x64xf32>
    %c2_80 = arith.constant 2 : index
    %c0_81 = arith.constant 0 : index
    %218 = memref.load %arg2[%c2_80, %c0_81] : memref<4x8xf32, #tpu.memory_space<smem>>
    %219 = vector.broadcast %218 : f32 to vector<8x64xf32>
    %220 = arith.mulf %217, %219 : vector<8x64xf32>
    %221 = vector.extract_strided_slice %1 {offsets = [1, 0, 0], sizes = [1, 8, 64], strides = [1, 1, 1]} : vector<8x8x64xf32> to vector<1x8x64xf32>
    %222 = vector.shape_cast %221 : vector<1x8x64xf32> to vector<8x64xf32>
    %c2_82 = arith.constant 2 : index
    %c1_83 = arith.constant 1 : index
    %223 = memref.load %arg2[%c2_82, %c1_83] : memref<4x8xf32, #tpu.memory_space<smem>>
    %224 = vector.broadcast %223 : f32 to vector<8x64xf32>
    %225 = arith.mulf %222, %224 : vector<8x64xf32>
    %226 = arith.addf %220, %225 : vector<8x64xf32>
    %227 = vector.extract_strided_slice %1 {offsets = [2, 0, 0], sizes = [1, 8, 64], strides = [1, 1, 1]} : vector<8x8x64xf32> to vector<1x8x64xf32>
    %228 = vector.shape_cast %227 : vector<1x8x64xf32> to vector<8x64xf32>
    %c2_84 = arith.constant 2 : index
    %c2_85 = arith.constant 2 : index
    %229 = memref.load %arg2[%c2_84, %c2_85] : memref<4x8xf32, #tpu.memory_space<smem>>
    %230 = vector.broadcast %229 : f32 to vector<8x64xf32>
    %231 = arith.mulf %228, %230 : vector<8x64xf32>
    %232 = arith.addf %226, %231 : vector<8x64xf32>
    %233 = vector.extract_strided_slice %1 {offsets = [3, 0, 0], sizes = [1, 8, 64], strides = [1, 1, 1]} : vector<8x8x64xf32> to vector<1x8x64xf32>
    %234 = vector.shape_cast %233 : vector<1x8x64xf32> to vector<8x64xf32>
    %c2_86 = arith.constant 2 : index
    %c3_87 = arith.constant 3 : index
    %235 = memref.load %arg2[%c2_86, %c3_87] : memref<4x8xf32, #tpu.memory_space<smem>>
    %236 = vector.broadcast %235 : f32 to vector<8x64xf32>
    %237 = arith.mulf %234, %236 : vector<8x64xf32>
    %238 = arith.addf %232, %237 : vector<8x64xf32>
    %239 = vector.extract_strided_slice %1 {offsets = [4, 0, 0], sizes = [1, 8, 64], strides = [1, 1, 1]} : vector<8x8x64xf32> to vector<1x8x64xf32>
    %240 = vector.shape_cast %239 : vector<1x8x64xf32> to vector<8x64xf32>
    %c2_88 = arith.constant 2 : index
    %c4_89 = arith.constant 4 : index
    %241 = memref.load %arg2[%c2_88, %c4_89] : memref<4x8xf32, #tpu.memory_space<smem>>
    %242 = vector.broadcast %241 : f32 to vector<8x64xf32>
    %243 = arith.mulf %240, %242 : vector<8x64xf32>
    %244 = arith.addf %238, %243 : vector<8x64xf32>
    %245 = vector.extract_strided_slice %1 {offsets = [5, 0, 0], sizes = [1, 8, 64], strides = [1, 1, 1]} : vector<8x8x64xf32> to vector<1x8x64xf32>
    %246 = vector.shape_cast %245 : vector<1x8x64xf32> to vector<8x64xf32>
    %c2_90 = arith.constant 2 : index
    %c5_91 = arith.constant 5 : index
    %247 = memref.load %arg2[%c2_90, %c5_91] : memref<4x8xf32, #tpu.memory_space<smem>>
    %248 = vector.broadcast %247 : f32 to vector<8x64xf32>
    %249 = arith.mulf %246, %248 : vector<8x64xf32>
    %250 = arith.addf %244, %249 : vector<8x64xf32>
    %251 = vector.extract_strided_slice %1 {offsets = [6, 0, 0], sizes = [1, 8, 64], strides = [1, 1, 1]} : vector<8x8x64xf32> to vector<1x8x64xf32>
    %252 = vector.shape_cast %251 : vector<1x8x64xf32> to vector<8x64xf32>
    %c2_92 = arith.constant 2 : index
    %c6_93 = arith.constant 6 : index
    %253 = memref.load %arg2[%c2_92, %c6_93] : memref<4x8xf32, #tpu.memory_space<smem>>
    %254 = vector.broadcast %253 : f32 to vector<8x64xf32>
    %255 = arith.mulf %252, %254 : vector<8x64xf32>
    %256 = arith.addf %250, %255 : vector<8x64xf32>
    %257 = vector.extract_strided_slice %1 {offsets = [7, 0, 0], sizes = [1, 8, 64], strides = [1, 1, 1]} : vector<8x8x64xf32> to vector<1x8x64xf32>
    %258 = vector.shape_cast %257 : vector<1x8x64xf32> to vector<8x64xf32>
    %c2_94 = arith.constant 2 : index
    %c7_95 = arith.constant 7 : index
    %259 = memref.load %arg2[%c2_94, %c7_95] : memref<4x8xf32, #tpu.memory_space<smem>>
    %260 = vector.broadcast %259 : f32 to vector<8x64xf32>
    %261 = arith.mulf %258, %260 : vector<8x64xf32>
    %262 = arith.addf %256, %261 : vector<8x64xf32>
    %c2_96 = arith.constant 2 : index
    %263 = memref.load %arg3[%c2_96] : memref<4xf32, #tpu.memory_space<smem>>
    %264 = vector.broadcast %263 : f32 to vector<8x64xf32>
    %265 = arith.addf %262, %264 : vector<8x64xf32>
    %266 = vector.shape_cast %265 : vector<8x64xf32> to vector<1x8x64xf32>
    %cst_97 = arith.constant dense<0.000000e+00> : vector<1xf32>
    %267 = vector.multi_reduction <add>, %266, %cst_97 [1, 2] : vector<1x8x64xf32> to vector<1xf32>
    %268 = vector.shape_cast %267 : vector<1xf32> to vector<1x1x1xf32>
    %269 = vector.extract %268[0, 0, 0] : f32 from vector<1x1x1xf32>
    %cst_98 = arith.constant 5.120000e+02 : f32
    %270 = arith.divf %269, %cst_98 : f32
    %271 = vector.broadcast %270 : f32 to vector<8x64xf32>
    %272 = arith.subf %265, %271 : vector<8x64xf32>
    %273 = vector.broadcast %270 : f32 to vector<8x64xf32>
    %274 = arith.subf %265, %273 : vector<8x64xf32>
    %275 = arith.mulf %272, %274 : vector<8x64xf32>
    %276 = vector.shape_cast %275 : vector<8x64xf32> to vector<1x8x64xf32>
    %cst_99 = arith.constant dense<0.000000e+00> : vector<1xf32>
    %277 = vector.multi_reduction <add>, %276, %cst_99 [1, 2] : vector<1x8x64xf32> to vector<1xf32>
    %278 = vector.shape_cast %277 : vector<1xf32> to vector<1x1x1xf32>
    %279 = vector.extract %278[0, 0, 0] : f32 from vector<1x1x1xf32>
    %cst_100 = arith.constant 5.120000e+02 : f32
    %280 = arith.divf %279, %cst_100 : f32
    %281 = vector.broadcast %270 : f32 to vector<8x64xf32>
    %282 = arith.subf %265, %281 : vector<8x64xf32>
    %cst_101 = arith.constant 9.99999974E-6 : f32
    %283 = arith.addf %280, %cst_101 : f32
    %284 = math.rsqrt %283 : f32
    %285 = vector.broadcast %284 : f32 to vector<8x64xf32>
    %286 = arith.mulf %282, %285 : vector<8x64xf32>
    %cst_102 = arith.constant 0.000000e+00 : f32
    %287 = vector.broadcast %cst_102 : f32 to vector<8x64xf32>
    %288 = arith.maximumf %286, %287 : vector<8x64xf32>
    %cst_103 = arith.constant dense<0.000000e+00> : vector<8x16xf32>
    %289 = tpu.matmul %288, %2, %cst_103 {dimension_numbers = #tpu.dot_dimension_numbers<[1], [0], [0], [1], [0, 0, 1, 1], [], []>} : vector<8x64xf32>, vector<64x16xf32>, vector<8x16xf32> -> vector<8x16xf32>
    %290 = vector.extract_strided_slice %289 {offsets = [0, 0], sizes = [2, 16], strides = [1, 1]} : vector<8x16xf32> to vector<2x16xf32>
    %cst_104 = arith.constant dense<0.000000e+00> : vector<16xf32>
    %291 = vector.multi_reduction <add>, %290, %cst_104 [0] : vector<2x16xf32> to vector<16xf32>
    %292 = vector.shape_cast %291 : vector<16xf32> to vector<1x16xf32>
    %cst_105 = arith.constant 2.000000e+00 : f32
    %293 = vector.broadcast %cst_105 : f32 to vector<1x16xf32>
    %294 = arith.divf %292, %293 : vector<1x16xf32>
    %c128 = arith.constant 128 : index
    %c0_106 = arith.constant 0 : index
    %295 = vector.load %arg5[%c128, %c0_106] : memref<256x16xf32, #tpu.memory_space<vmem>>, vector<16x16xf32>
    %cst_107 = arith.constant dense<0.000000e+00> : vector<1x16xf32>
    %296 = tpu.matmul %294, %295, %cst_107 {dimension_numbers = #tpu.dot_dimension_numbers<[1], [0], [0], [1], [0, 0, 1, 1], [], []>} : vector<1x16xf32>, vector<16x16xf32>, vector<1x16xf32> -> vector<1x16xf32>
    %297 = arith.addf %215, %296 : vector<1x16xf32>
    %298 = vector.extract_strided_slice %289 {offsets = [2, 0], sizes = [2, 16], strides = [1, 1]} : vector<8x16xf32> to vector<2x16xf32>
    %cst_108 = arith.constant dense<0.000000e+00> : vector<16xf32>
    %299 = vector.multi_reduction <add>, %298, %cst_108 [0] : vector<2x16xf32> to vector<16xf32>
    %300 = vector.shape_cast %299 : vector<16xf32> to vector<1x16xf32>
    %cst_109 = arith.constant 2.000000e+00 : f32
    %301 = vector.broadcast %cst_109 : f32 to vector<1x16xf32>
    %302 = arith.divf %300, %301 : vector<1x16xf32>
    %c144 = arith.constant 144 : index
    %c0_110 = arith.constant 0 : index
    %303 = vector.load %arg5[%c144, %c0_110] : memref<256x16xf32, #tpu.memory_space<vmem>>, vector<16x16xf32>
    %cst_111 = arith.constant dense<0.000000e+00> : vector<1x16xf32>
    %304 = tpu.matmul %302, %303, %cst_111 {dimension_numbers = #tpu.dot_dimension_numbers<[1], [0], [0], [1], [0, 0, 1, 1], [], []>} : vector<1x16xf32>, vector<16x16xf32>, vector<1x16xf32> -> vector<1x16xf32>
    %305 = arith.addf %297, %304 : vector<1x16xf32>
    %306 = vector.extract_strided_slice %289 {offsets = [4, 0], sizes = [2, 16], strides = [1, 1]} : vector<8x16xf32> to vector<2x16xf32>
    %cst_112 = arith.constant dense<0.000000e+00> : vector<16xf32>
    %307 = vector.multi_reduction <add>, %306, %cst_112 [0] : vector<2x16xf32> to vector<16xf32>
    %308 = vector.shape_cast %307 : vector<16xf32> to vector<1x16xf32>
    %cst_113 = arith.constant 2.000000e+00 : f32
    %309 = vector.broadcast %cst_113 : f32 to vector<1x16xf32>
    %310 = arith.divf %308, %309 : vector<1x16xf32>
    %c160 = arith.constant 160 : index
    %c0_114 = arith.constant 0 : index
    %311 = vector.load %arg5[%c160, %c0_114] : memref<256x16xf32, #tpu.memory_space<vmem>>, vector<16x16xf32>
    %cst_115 = arith.constant dense<0.000000e+00> : vector<1x16xf32>
    %312 = tpu.matmul %310, %311, %cst_115 {dimension_numbers = #tpu.dot_dimension_numbers<[1], [0], [0], [1], [0, 0, 1, 1], [], []>} : vector<1x16xf32>, vector<16x16xf32>, vector<1x16xf32> -> vector<1x16xf32>
    %313 = arith.addf %305, %312 : vector<1x16xf32>
    %314 = vector.extract_strided_slice %289 {offsets = [6, 0], sizes = [2, 16], strides = [1, 1]} : vector<8x16xf32> to vector<2x16xf32>
    %cst_116 = arith.constant dense<0.000000e+00> : vector<16xf32>
    %315 = vector.multi_reduction <add>, %314, %cst_116 [0] : vector<2x16xf32> to vector<16xf32>
    %316 = vector.shape_cast %315 : vector<16xf32> to vector<1x16xf32>
    %cst_117 = arith.constant 2.000000e+00 : f32
    %317 = vector.broadcast %cst_117 : f32 to vector<1x16xf32>
    %318 = arith.divf %316, %317 : vector<1x16xf32>
    %c176 = arith.constant 176 : index
    %c0_118 = arith.constant 0 : index
    %319 = vector.load %arg5[%c176, %c0_118] : memref<256x16xf32, #tpu.memory_space<vmem>>, vector<16x16xf32>
    %cst_119 = arith.constant dense<0.000000e+00> : vector<1x16xf32>
    %320 = tpu.matmul %318, %319, %cst_119 {dimension_numbers = #tpu.dot_dimension_numbers<[1], [0], [0], [1], [0, 0, 1, 1], [], []>} : vector<1x16xf32>, vector<16x16xf32>, vector<1x16xf32> -> vector<1x16xf32>
    %321 = arith.addf %313, %320 : vector<1x16xf32>
    %322 = vector.extract_strided_slice %1 {offsets = [0, 0, 0], sizes = [1, 8, 64], strides = [1, 1, 1]} : vector<8x8x64xf32> to vector<1x8x64xf32>
    %323 = vector.shape_cast %322 : vector<1x8x64xf32> to vector<8x64xf32>
    %c3_120 = arith.constant 3 : index
    %c0_121 = arith.constant 0 : index
    %324 = memref.load %arg2[%c3_120, %c0_121] : memref<4x8xf32, #tpu.memory_space<smem>>
    %325 = vector.broadcast %324 : f32 to vector<8x64xf32>
    %326 = arith.mulf %323, %325 : vector<8x64xf32>
    %327 = vector.extract_strided_slice %1 {offsets = [1, 0, 0], sizes = [1, 8, 64], strides = [1, 1, 1]} : vector<8x8x64xf32> to vector<1x8x64xf32>
    %328 = vector.shape_cast %327 : vector<1x8x64xf32> to vector<8x64xf32>
    %c3_122 = arith.constant 3 : index
    %c1_123 = arith.constant 1 : index
    %329 = memref.load %arg2[%c3_122, %c1_123] : memref<4x8xf32, #tpu.memory_space<smem>>
    %330 = vector.broadcast %329 : f32 to vector<8x64xf32>
    %331 = arith.mulf %328, %330 : vector<8x64xf32>
    %332 = arith.addf %326, %331 : vector<8x64xf32>
    %333 = vector.extract_strided_slice %1 {offsets = [2, 0, 0], sizes = [1, 8, 64], strides = [1, 1, 1]} : vector<8x8x64xf32> to vector<1x8x64xf32>
    %334 = vector.shape_cast %333 : vector<1x8x64xf32> to vector<8x64xf32>
    %c3_124 = arith.constant 3 : index
    %c2_125 = arith.constant 2 : index
    %335 = memref.load %arg2[%c3_124, %c2_125] : memref<4x8xf32, #tpu.memory_space<smem>>
    %336 = vector.broadcast %335 : f32 to vector<8x64xf32>
    %337 = arith.mulf %334, %336 : vector<8x64xf32>
    %338 = arith.addf %332, %337 : vector<8x64xf32>
    %339 = vector.extract_strided_slice %1 {offsets = [3, 0, 0], sizes = [1, 8, 64], strides = [1, 1, 1]} : vector<8x8x64xf32> to vector<1x8x64xf32>
    %340 = vector.shape_cast %339 : vector<1x8x64xf32> to vector<8x64xf32>
    %c3_126 = arith.constant 3 : index
    %c3_127 = arith.constant 3 : index
    %341 = memref.load %arg2[%c3_126, %c3_127] : memref<4x8xf32, #tpu.memory_space<smem>>
    %342 = vector.broadcast %341 : f32 to vector<8x64xf32>
    %343 = arith.mulf %340, %342 : vector<8x64xf32>
    %344 = arith.addf %338, %343 : vector<8x64xf32>
    %345 = vector.extract_strided_slice %1 {offsets = [4, 0, 0], sizes = [1, 8, 64], strides = [1, 1, 1]} : vector<8x8x64xf32> to vector<1x8x64xf32>
    %346 = vector.shape_cast %345 : vector<1x8x64xf32> to vector<8x64xf32>
    %c3_128 = arith.constant 3 : index
    %c4_129 = arith.constant 4 : index
    %347 = memref.load %arg2[%c3_128, %c4_129] : memref<4x8xf32, #tpu.memory_space<smem>>
    %348 = vector.broadcast %347 : f32 to vector<8x64xf32>
    %349 = arith.mulf %346, %348 : vector<8x64xf32>
    %350 = arith.addf %344, %349 : vector<8x64xf32>
    %351 = vector.extract_strided_slice %1 {offsets = [5, 0, 0], sizes = [1, 8, 64], strides = [1, 1, 1]} : vector<8x8x64xf32> to vector<1x8x64xf32>
    %352 = vector.shape_cast %351 : vector<1x8x64xf32> to vector<8x64xf32>
    %c3_130 = arith.constant 3 : index
    %c5_131 = arith.constant 5 : index
    %353 = memref.load %arg2[%c3_130, %c5_131] : memref<4x8xf32, #tpu.memory_space<smem>>
    %354 = vector.broadcast %353 : f32 to vector<8x64xf32>
    %355 = arith.mulf %352, %354 : vector<8x64xf32>
    %356 = arith.addf %350, %355 : vector<8x64xf32>
    %357 = vector.extract_strided_slice %1 {offsets = [6, 0, 0], sizes = [1, 8, 64], strides = [1, 1, 1]} : vector<8x8x64xf32> to vector<1x8x64xf32>
    %358 = vector.shape_cast %357 : vector<1x8x64xf32> to vector<8x64xf32>
    %c3_132 = arith.constant 3 : index
    %c6_133 = arith.constant 6 : index
    %359 = memref.load %arg2[%c3_132, %c6_133] : memref<4x8xf32, #tpu.memory_space<smem>>
    %360 = vector.broadcast %359 : f32 to vector<8x64xf32>
    %361 = arith.mulf %358, %360 : vector<8x64xf32>
    %362 = arith.addf %356, %361 : vector<8x64xf32>
    %363 = vector.extract_strided_slice %1 {offsets = [7, 0, 0], sizes = [1, 8, 64], strides = [1, 1, 1]} : vector<8x8x64xf32> to vector<1x8x64xf32>
    %364 = vector.shape_cast %363 : vector<1x8x64xf32> to vector<8x64xf32>
    %c3_134 = arith.constant 3 : index
    %c7_135 = arith.constant 7 : index
    %365 = memref.load %arg2[%c3_134, %c7_135] : memref<4x8xf32, #tpu.memory_space<smem>>
    %366 = vector.broadcast %365 : f32 to vector<8x64xf32>
    %367 = arith.mulf %364, %366 : vector<8x64xf32>
    %368 = arith.addf %362, %367 : vector<8x64xf32>
    %c3_136 = arith.constant 3 : index
    %369 = memref.load %arg3[%c3_136] : memref<4xf32, #tpu.memory_space<smem>>
    %370 = vector.broadcast %369 : f32 to vector<8x64xf32>
    %371 = arith.addf %368, %370 : vector<8x64xf32>
    %372 = vector.shape_cast %371 : vector<8x64xf32> to vector<1x8x64xf32>
    %cst_137 = arith.constant dense<0.000000e+00> : vector<1xf32>
    %373 = vector.multi_reduction <add>, %372, %cst_137 [1, 2] : vector<1x8x64xf32> to vector<1xf32>
    %374 = vector.shape_cast %373 : vector<1xf32> to vector<1x1x1xf32>
    %375 = vector.extract %374[0, 0, 0] : f32 from vector<1x1x1xf32>
    %cst_138 = arith.constant 5.120000e+02 : f32
    %376 = arith.divf %375, %cst_138 : f32
    %377 = vector.broadcast %376 : f32 to vector<8x64xf32>
    %378 = arith.subf %371, %377 : vector<8x64xf32>
    %379 = vector.broadcast %376 : f32 to vector<8x64xf32>
    %380 = arith.subf %371, %379 : vector<8x64xf32>
    %381 = arith.mulf %378, %380 : vector<8x64xf32>
    %382 = vector.shape_cast %381 : vector<8x64xf32> to vector<1x8x64xf32>
    %cst_139 = arith.constant dense<0.000000e+00> : vector<1xf32>
    %383 = vector.multi_reduction <add>, %382, %cst_139 [1, 2] : vector<1x8x64xf32> to vector<1xf32>
    %384 = vector.shape_cast %383 : vector<1xf32> to vector<1x1x1xf32>
    %385 = vector.extract %384[0, 0, 0] : f32 from vector<1x1x1xf32>
    %cst_140 = arith.constant 5.120000e+02 : f32
    %386 = arith.divf %385, %cst_140 : f32
    %387 = vector.broadcast %376 : f32 to vector<8x64xf32>
    %388 = arith.subf %371, %387 : vector<8x64xf32>
    %cst_141 = arith.constant 9.99999974E-6 : f32
    %389 = arith.addf %386, %cst_141 : f32
    %390 = math.rsqrt %389 : f32
    %391 = vector.broadcast %390 : f32 to vector<8x64xf32>
    %392 = arith.mulf %388, %391 : vector<8x64xf32>
    %cst_142 = arith.constant 0.000000e+00 : f32
    %393 = vector.broadcast %cst_142 : f32 to vector<8x64xf32>
    %394 = arith.maximumf %392, %393 : vector<8x64xf32>
    %cst_143 = arith.constant dense<0.000000e+00> : vector<8x16xf32>
    %395 = tpu.matmul %394, %2, %cst_143 {dimension_numbers = #tpu.dot_dimension_numbers<[1], [0], [0], [1], [0, 0, 1, 1], [], []>} : vector<8x64xf32>, vector<64x16xf32>, vector<8x16xf32> -> vector<8x16xf32>
    %396 = vector.extract_strided_slice %395 {offsets = [0, 0], sizes = [2, 16], strides = [1, 1]} : vector<8x16xf32> to vector<2x16xf32>
    %cst_144 = arith.constant dense<0.000000e+00> : vector<16xf32>
    %397 = vector.multi_reduction <add>, %396, %cst_144 [0] : vector<2x16xf32> to vector<16xf32>
    %398 = vector.shape_cast %397 : vector<16xf32> to vector<1x16xf32>
    %cst_145 = arith.constant 2.000000e+00 : f32
    %399 = vector.broadcast %cst_145 : f32 to vector<1x16xf32>
    %400 = arith.divf %398, %399 : vector<1x16xf32>
    %c192 = arith.constant 192 : index
    %c0_146 = arith.constant 0 : index
    %401 = vector.load %arg5[%c192, %c0_146] : memref<256x16xf32, #tpu.memory_space<vmem>>, vector<16x16xf32>
    %cst_147 = arith.constant dense<0.000000e+00> : vector<1x16xf32>
    %402 = tpu.matmul %400, %401, %cst_147 {dimension_numbers = #tpu.dot_dimension_numbers<[1], [0], [0], [1], [0, 0, 1, 1], [], []>} : vector<1x16xf32>, vector<16x16xf32>, vector<1x16xf32> -> vector<1x16xf32>
    %403 = arith.addf %321, %402 : vector<1x16xf32>
    %404 = vector.extract_strided_slice %395 {offsets = [2, 0], sizes = [2, 16], strides = [1, 1]} : vector<8x16xf32> to vector<2x16xf32>
    %cst_148 = arith.constant dense<0.000000e+00> : vector<16xf32>
    %405 = vector.multi_reduction <add>, %404, %cst_148 [0] : vector<2x16xf32> to vector<16xf32>
    %406 = vector.shape_cast %405 : vector<16xf32> to vector<1x16xf32>
    %cst_149 = arith.constant 2.000000e+00 : f32
    %407 = vector.broadcast %cst_149 : f32 to vector<1x16xf32>
    %408 = arith.divf %406, %407 : vector<1x16xf32>
    %c208 = arith.constant 208 : index
    %c0_150 = arith.constant 0 : index
    %409 = vector.load %arg5[%c208, %c0_150] : memref<256x16xf32, #tpu.memory_space<vmem>>, vector<16x16xf32>
    %cst_151 = arith.constant dense<0.000000e+00> : vector<1x16xf32>
    %410 = tpu.matmul %408, %409, %cst_151 {dimension_numbers = #tpu.dot_dimension_numbers<[1], [0], [0], [1], [0, 0, 1, 1], [], []>} : vector<1x16xf32>, vector<16x16xf32>, vector<1x16xf32> -> vector<1x16xf32>
    %411 = arith.addf %403, %410 : vector<1x16xf32>
    %412 = vector.extract_strided_slice %395 {offsets = [4, 0], sizes = [2, 16], strides = [1, 1]} : vector<8x16xf32> to vector<2x16xf32>
    %cst_152 = arith.constant dense<0.000000e+00> : vector<16xf32>
    %413 = vector.multi_reduction <add>, %412, %cst_152 [0] : vector<2x16xf32> to vector<16xf32>
    %414 = vector.shape_cast %413 : vector<16xf32> to vector<1x16xf32>
    %cst_153 = arith.constant 2.000000e+00 : f32
    %415 = vector.broadcast %cst_153 : f32 to vector<1x16xf32>
    %416 = arith.divf %414, %415 : vector<1x16xf32>
    %c224 = arith.constant 224 : index
    %c0_154 = arith.constant 0 : index
    %417 = vector.load %arg5[%c224, %c0_154] : memref<256x16xf32, #tpu.memory_space<vmem>>, vector<16x16xf32>
    %cst_155 = arith.constant dense<0.000000e+00> : vector<1x16xf32>
    %418 = tpu.matmul %416, %417, %cst_155 {dimension_numbers = #tpu.dot_dimension_numbers<[1], [0], [0], [1], [0, 0, 1, 1], [], []>} : vector<1x16xf32>, vector<16x16xf32>, vector<1x16xf32> -> vector<1x16xf32>
    %419 = arith.addf %411, %418 : vector<1x16xf32>
    %420 = vector.extract_strided_slice %395 {offsets = [6, 0], sizes = [2, 16], strides = [1, 1]} : vector<8x16xf32> to vector<2x16xf32>
    %cst_156 = arith.constant dense<0.000000e+00> : vector<16xf32>
    %421 = vector.multi_reduction <add>, %420, %cst_156 [0] : vector<2x16xf32> to vector<16xf32>
    %422 = vector.shape_cast %421 : vector<16xf32> to vector<1x16xf32>
    %cst_157 = arith.constant 2.000000e+00 : f32
    %423 = vector.broadcast %cst_157 : f32 to vector<1x16xf32>
    %424 = arith.divf %422, %423 : vector<1x16xf32>
    %c240 = arith.constant 240 : index
    %c0_158 = arith.constant 0 : index
    %425 = vector.load %arg5[%c240, %c0_158] : memref<256x16xf32, #tpu.memory_space<vmem>>, vector<16x16xf32>
    %cst_159 = arith.constant dense<0.000000e+00> : vector<1x16xf32>
    %426 = tpu.matmul %424, %425, %cst_159 {dimension_numbers = #tpu.dot_dimension_numbers<[1], [0], [0], [1], [0, 0, 1, 1], [], []>} : vector<1x16xf32>, vector<16x16xf32>, vector<1x16xf32> -> vector<1x16xf32>
    %427 = arith.addf %419, %426 : vector<1x16xf32>
    %c0_160 = arith.constant 0 : index
    %c0_161 = arith.constant 0 : index
    %c0_162 = arith.constant 0 : index
    %428 = vector.load %arg7[%c0_160, %c0_161, %c0_162] : memref<1x1x16xf32, #tpu.memory_space<vmem>>, vector<1x1x16xf32>
    %429 = vector.shape_cast %428 : vector<1x1x16xf32> to vector<1x16xf32>
    %430 = vector.shape_cast %427 : vector<1x16xf32> to vector<1x1x16xf32>
    tpu.vector_store %arg7[%c0_160, %c0_161, %c0_162], %430 {strides = array<i32>} : memref<1x1x16xf32, #tpu.memory_space<vmem>>, vector<1x1x16xf32>,
    return
  }
  func.func @transform_0(%arg0: i32) -> (i32, i32, i32, i32) {
    %c0_i32 = arith.constant 0 : i32
    %c0_i32_0 = arith.constant 0 : i32
    %c0_i32_1 = arith.constant 0 : i32
    %c0_i32_2 = arith.constant 0 : i32
    return %arg0, %c0_i32, %c0_i32_0, %c0_i32_1 : i32, i32, i32, i32
  }
  func.func @transform_1(%arg0: i32) -> (i32, i32) {
    %c0_i32 = arith.constant 0 : i32
    %c0_i32_0 = arith.constant 0 : i32
    %c0_i32_1 = arith.constant 0 : i32
    return %c0_i32, %c0_i32_0 : i32, i32
  }
  func.func @transform_2(%arg0: i32) -> i32 {
    %c0_i32 = arith.constant 0 : i32
    %c0_i32_0 = arith.constant 0 : i32
    return %c0_i32 : i32
  }
  func.func @transform_3(%arg0: i32) -> (i32, i32) {
    %c0_i32 = arith.constant 0 : i32
    %c0_i32_0 = arith.constant 0 : i32
    %c0_i32_1 = arith.constant 0 : i32
    return %c0_i32, %c0_i32_0 : i32, i32
  }
  func.func @transform_4(%arg0: i32) -> (i32, i32) {
    %c0_i32 = arith.constant 0 : i32
    %c0_i32_0 = arith.constant 0 : i32
    %c0_i32_1 = arith.constant 0 : i32
    return %c0_i32, %c0_i32_0 : i32, i32
  }
  func.func @transform_5(%arg0: i32) -> (i32, i32) {
    %c0_i32 = arith.constant 0 : i32
    %c0_i32_0 = arith.constant 0 : i32
    %c0_i32_1 = arith.constant 0 : i32
    return %c0_i32, %c0_i32_0 : i32, i32
  }
  func.func @transform_6(%arg0: i32) -> (i32, i32, i32) {
    %c0_i32 = arith.constant 0 : i32
    %c0_i32_0 = arith.constant 0 : i32
    %c0_i32_1 = arith.constant 0 : i32
    return %arg0, %c0_i32, %c0_i32_0 : i32, i32, i32
  }
}

</mosaic_0001>

<llo_original>
// kernel: gating_forward.1
$region0: #{gating_forward.1}
  #allocation0 [shape = 'u32[]', space=smem, size = 0x4, offset = 0x4, fixed_abs, tag = 'smem constant byte address 0x4 - core index']
  #allocation1 [shape = 'u32[144,128]{1,0:T(1,128)}', space=vmem, size = 0x12000, scoped, tag = 'internal scratch']
  %s0 = inlined_call_operand.vmem [shape: f32[2,8,8,64], index: 0, kind: input, shape index: {}]
  %s1 = inlined_call_operand.vmem [shape: f32[4,8], index: 1, kind: input, shape index: {}]
  %s2 = inlined_call_operand.vmem [shape: f32[4], index: 2, kind: input, shape index: {}]
  %s3 = inlined_call_operand.vmem [shape: f32[64,16], index: 3, kind: input, shape index: {}]
  %s4 = inlined_call_operand.vmem [shape: f32[256,16], index: 4, kind: input, shape index: {}]
  %s5 = inlined_call_operand.vmem [shape: f32[1,16], index: 5, kind: input, shape index: {}]
  %s6 = inlined_call_operand.hbm [shape: f32[2,1,16], index: 6, kind: output, shape index: {}]
  %s7 = sld [smem:[#allocation0]]
  $region65: #{gating_forward.1} parent=0
    _
  %s9 = ssub.s32 1, %s7
  %s10 = scalar_select 0, %s9, %s7
  $region1: #{gating_forward.1} parent=0
    #allocation2 [shape = 'u8[2048]{0}', space=smem, size = 0x800, scoped, tag = 'input window, operand 1, single buffered']
    #allocation3 [shape = 's32[2]{0}', space=sflag, size = 0x8, scoped, tag = 'scoped memory for gating_forward.1']
    #allocation4 [shape = 's32[2]{0}', space=sflag, size = 0x8, scoped, tag = 'scoped memory for gating_forward.1']
    #allocation5 [shape = 'u8[512]{0}', space=smem, size = 0x200, scoped, tag = 'input window, operand 2, single buffered']
    #allocation6 [shape = 's32[1]{0}', space=sflag, size = 0x4, scoped, tag = 'scoped memory for gating_forward.1']
    #allocation7 [shape = 'u8[1024]{0}', space=vmem, size = 0x400, scoped, tag = 'output window, operand 0']
    %11 = vsyncpa [#allocation4], 0
    %12 = vsyncpa [#allocation6], 0
    %13 = vsyncpa [#allocation3], 0
    %s14 = scalar_lea.sflag [#allocation3], 1
    %15 = vsyncpa %s14, 0
    loop: start=0, step=1, limit=4
    $region2: #{gating_forward.1} parent=1 // loop_pre_header
      _
    $region3: #{gating_forward.1} parent=1 // loop_header
      %s17 = sphi 0, %s21
      %p18 = scmp.ge.s32.totalorder %s17, 4
      %s27 = sphi 0, %s29
      %s30 = sphi 0, %s27
      %s31 = sphi 0, %s30
      %s47 = sphi 0, %s31
      %s51 = sphi 0, %s51
      %s53 = sphi 0, %s51
      %s54 = sphi 0, %s53
      %s68 = sphi 0, %s54
      %s72 = sphi 0, %s72
      %s74 = sphi 0, %s72
      %s75 = sphi 0, %s74
      %s89 = sphi 0, %s75
      %s93 = sphi 0, %s93
      %s95 = sphi 0, %s93
      %s96 = sphi 0, %s95
      %s110 = sphi 0, %s96
      %s114 = sphi 0, %s114
      %s116 = sphi 0, %s114
      %s117 = sphi 0, %s116
      %s131 = sphi 0, %s117
      %s135 = sphi 0, %s135
      %s137 = sphi 0, %s135
      %s138 = sphi 0, %s137
      %s152 = sphi 0, %s138
      %s158 = sphi 0, %s160
      %s161 = sphi 0, %s158
      %s162 = sphi 0, %s161
      %s178 = sphi 0, %s162
    $region4: #{gating_forward.1} parent=1 // loop_header_branch
      %20 = sbr.rel (%p18) target = $region8
    $region5: #{gating_forward.1} parent=1 // loop_body
      %s22 = ssub.s32 %s17, 1
      %s23 = ssub.s32 %s17, 2
      %s24 = sadd.s32 %s17, 1
      %s25 = ssub.s32 %s17, %s24
      %p26 = scmp.eq.s32.totalorder %s25, 0
      %s28 = sadd.s32 %s27, 1
      %s29 = scalar_select %p26, %s27, %s28
      %p32 = pneg %p26
      %p33 = scmp.eq.s32.totalorder %s17, 1
      %p34 = por %p32, %p33
      %p35 = scmp.ne.s32.totalorder %s27, %s30
      %p36 = scmp.eq.s32.totalorder %s17, 0
      %p37 = por %p35, %p36
      %p38 = scmp.ne.s32.totalorder %s27, %s30
      %p39 = scmp.eq.s32.totalorder %s22, 1
      %p40 = por %p38, %p39
      %p41 = scmp.ne.s32.totalorder %s30, %s31
      %p42 = scmp.eq.s32.totalorder %s22, 0
      %p43 = por %p41, %p42
      %p44 = scmp.ne.s32.totalorder %s30, %s31
      %p45 = scmp.eq.s32.totalorder %s23, 1
      %p46 = por %p44, %p45
      %p48 = scmp.ne.s32.totalorder %s31, %s47
      %p49 = scmp.eq.s32.totalorder %s23, 0
      %p50 = por %p48, %p49
      %s52 = sadd.s32 %s51, 1
      %p55 = scmp.eq.s32.totalorder %s17, 1
      %p56 = scmp.ne.s32.totalorder %s51, %s53
      %p57 = scmp.eq.s32.totalorder %s17, 0
      %p58 = por %p56, %p57
      %p59 = scmp.ne.s32.totalorder %s51, %s53
      %p60 = scmp.eq.s32.totalorder %s22, 1
      %p61 = por %p59, %p60
      %p62 = scmp.ne.s32.totalorder %s53, %s54
      %p63 = scmp.eq.s32.totalorder %s22, 0
      %p64 = por %p62, %p63
      %p65 = scmp.ne.s32.totalorder %s53, %s54
      %p66 = scmp.eq.s32.totalorder %s23, 1
      %p67 = por %p65, %p66
      %p69 = scmp.ne.s32.totalorder %s54, %s68
      %p70 = scmp.eq.s32.totalorder %s23, 0
      %p71 = por %p69, %p70
      %s73 = sadd.s32 %s72, 1
      %p76 = scmp.eq.s32.totalorder %s17, 1
      %p77 = scmp.ne.s32.totalorder %s72, %s74
      %p78 = scmp.eq.s32.totalorder %s17, 0
      %p79 = por %p77, %p78
      %p80 = scmp.ne.s32.totalorder %s72, %s74
      %p81 = scmp.eq.s32.totalorder %s22, 1
      %p82 = por %p80, %p81
      %p83 = scmp.ne.s32.totalorder %s74, %s75
      %p84 = scmp.eq.s32.totalorder %s22, 0
      %p85 = por %p83, %p84
      %p86 = scmp.ne.s32.totalorder %s74, %s75
      %p87 = scmp.eq.s32.totalorder %s23, 1
      %p88 = por %p86, %p87
      %p90 = scmp.ne.s32.totalorder %s75, %s89
      %p91 = scmp.eq.s32.totalorder %s23, 0
      %p92 = por %p90, %p91
      %s94 = sadd.s32 %s93, 1
      %p97 = scmp.eq.s32.totalorder %s17, 1
      %p98 = scmp.ne.s32.totalorder %s93, %s95
      %p99 = scmp.eq.s32.totalorder %s17, 0
      %p100 = por %p98, %p99
      %p101 = scmp.ne.s32.totalorder %s93, %s95
      %p102 = scmp.eq.s32.totalorder %s22, 1
      %p103 = por %p101, %p102
      %p104 = scmp.ne.s32.totalorder %s95, %s96
      %p105 = scmp.eq.s32.totalorder %s22, 0
      %p106 = por %p104, %p105
      %p107 = scmp.ne.s32.totalorder %s95, %s96
      %p108 = scmp.eq.s32.totalorder %s23, 1
      %p109 = por %p107, %p108
      %p111 = scmp.ne.s32.totalorder %s96, %s110
      %p112 = scmp.eq.s32.totalorder %s23, 0
      %p113 = por %p111, %p112
      %s115 = sadd.s32 %s114, 1
      %p118 = scmp.eq.s32.totalorder %s17, 1
      %p119 = scmp.ne.s32.totalorder %s114, %s116
      %p120 = scmp.eq.s32.totalorder %s17, 0
      %p121 = por %p119, %p120
      %p122 = scmp.ne.s32.totalorder %s114, %s116
      %p123 = scmp.eq.s32.totalorder %s22, 1
      %p124 = por %p122, %p123
      %p125 = scmp.ne.s32.totalorder %s116, %s117
      %p126 = scmp.eq.s32.totalorder %s22, 0
      %p127 = por %p125, %p126
      %p128 = scmp.ne.s32.totalorder %s116, %s117
      %p129 = scmp.eq.s32.totalorder %s23, 1
      %p130 = por %p128, %p129
      %p132 = scmp.ne.s32.totalorder %s117, %s131
      %p133 = scmp.eq.s32.totalorder %s23, 0
      %p134 = por %p132, %p133
      %s136 = sadd.s32 %s135, 1
      %p139 = scmp.eq.s32.totalorder %s17, 1
      %p140 = scmp.ne.s32.totalorder %s135, %s137
      %p141 = scmp.eq.s32.totalorder %s17, 0
      %p142 = por %p140, %p141
      %p143 = scmp.ne.s32.totalorder %s135, %s137
      %p144 = scmp.eq.s32.totalorder %s22, 1
      %p145 = por %p143, %p144
      %p146 = scmp.ne.s32.totalorder %s137, %s138
      %p147 = scmp.eq.s32.totalorder %s22, 0
      %p148 = por %p146, %p147
      %p149 = scmp.ne.s32.totalorder %s137, %s138
      %p150 = scmp.eq.s32.totalorder %s23, 1
      %p151 = por %p149, %p150
      %p153 = scmp.ne.s32.totalorder %s138, %s152
      %p154 = scmp.eq.s32.totalorder %s23, 0
      %p155 = por %p153, %p154
      %s156 = ssub.s32 %s17, %s24
      %p157 = scmp.eq.s32.totalorder %s156, 0
      %s159 = sadd.s32 %s158, 1
      %s160 = scalar_select %p157, %s158, %s159
      %p163 = pneg %p157
      %p164 = scmp.eq.s32.totalorder %s17, 1
      %p165 = por %p163, %p164
      %p166 = scmp.ne.s32.totalorder %s158, %s161
      %p167 = scmp.eq.s32.totalorder %s17, 0
      %p168 = por %p166, %p167
      %p169 = scmp.ne.s32.totalorder %s158, %s161
      %p170 = scmp.eq.s32.totalorder %s22, 1
      %p171 = por %p169, %p170
      %p172 = scmp.ne.s32.totalorder %s161, %s162
      %p173 = scmp.eq.s32.totalorder %s22, 0
      %p174 = por %p172, %p173
      %p175 = scmp.ne.s32.totalorder %s161, %s162
      %p176 = scmp.eq.s32.totalorder %s23, 1
      %p177 = por %p175, %p176
      %p179 = scmp.ne.s32.totalorder %s162, %s178
      %p180 = scmp.eq.s32.totalorder %s23, 0
      %p181 = por %p179, %p180
      %p182 = scmp.le.s32.totalorder 1, %s17
      %p183 = scmp.lt.s32.totalorder %s17, 3
      %p184 = pnand %p182, %p183
      %p185 = pneg %p184
      // Predicated region
      $region9: #{gating_forward.1} parent=5 // pred_check
        _
      $region10: #{gating_forward.1} parent=5 // pred_check_branch
        %187 = sbr.rel (%p184) target = $region12
      $region11: #{gating_forward.1} parent=5 // pred_region
        %s188 = ssub.s32 %s17, 1
        // Predicated region
        $region13: #{gating_forward.1} parent=11 // pred_check
          %p189 = pneg %p64
        $region14: #{gating_forward.1} parent=11 // pred_check_branch
          %191 = sbr.rel (%p189) target = $region16
        $region15: #{gating_forward.1} parent=11 // pred_region
          %s193 = ssub.s32 64, 64
          %194 = vsyncadd [#allocation4], %s193
          %s196 = sshll.u32 %s1, 4
          %s197 = int_to_ptr.vmem [resolvable:$true] %s196
          %199 = dma.vmem_to_smem %s197, 64, [#allocation2], [#allocation4]
        $region16: #{gating_forward.1} parent=11 // pred_fallthru
          _
        // Predicated region
        $region17: #{gating_forward.1} parent=11 // pred_check
          %p200 = pneg %p85
        $region18: #{gating_forward.1} parent=11 // pred_check_branch
          %202 = sbr.rel (%p200) target = $region20
        $region19: #{gating_forward.1} parent=11 // pred_region
          %s204 = ssub.s32 16, 16
          %205 = vsyncadd [#allocation6], %s204
          %s207 = sshll.u32 %s2, 4
          %s208 = int_to_ptr.vmem [resolvable:$true] %s207
          %210 = dma.vmem_to_smem %s208, 16, [#allocation5], [#allocation6]
        $region20: #{gating_forward.1} parent=11 // pred_fallthru
          _
        // Predicated region
        $region21: #{gating_forward.1} parent=11 // pred_check
          %p211 = pneg %p106
        $region22: #{gating_forward.1} parent=11 // pred_check_branch
          %213 = sbr.rel (%p211) target = $region24
        $region23: #{gating_forward.1} parent=11 // pred_region
          _
        $region24: #{gating_forward.1} parent=11 // pred_fallthru
          _
        // Predicated region
        $region25: #{gating_forward.1} parent=11 // pred_check
          %p214 = pneg %p127
        $region26: #{gating_forward.1} parent=11 // pred_check_branch
          %216 = sbr.rel (%p214) target = $region28
        $region27: #{gating_forward.1} parent=11 // pred_region
          _
        $region28: #{gating_forward.1} parent=11 // pred_fallthru
          _
        // Predicated region
        $region29: #{gating_forward.1} parent=11 // pred_check
          %p217 = pneg %p148
        $region30: #{gating_forward.1} parent=11 // pred_check_branch
          %219 = sbr.rel (%p217) target = $region32
        $region31: #{gating_forward.1} parent=11 // pred_region
          _
        $region32: #{gating_forward.1} parent=11 // pred_fallthru
          _
      $region12: #{gating_forward.1} parent=5 // pred_fallthru
        _
      %p220 = scmp.lt.s32.totalorder %s17, 2
      // Predicated region
      $region33: #{gating_forward.1} parent=5 // pred_check
        %p221 = pneg %p220
      $region34: #{gating_forward.1} parent=5 // pred_check_branch
        %223 = sbr.rel (%p221) target = $region36
      $region35: #{gating_forward.1} parent=5 // pred_region
        // Predicated region
        $region37: #{gating_forward.1} parent=35 // pred_check
          %p224 = pneg %p37
        $region38: #{gating_forward.1} parent=35 // pred_check_branch
          %226 = sbr.rel (%p224) target = $region40
        $region39: #{gating_forward.1} parent=35 // pred_region
          %p227 = scmp.lt.s32.totalorder %s17, 1
          %s228 = scalar_select %p227, %s17, 1
          %s229 = smul.addr %s228, 8
          %s230 = smul.addr %s229, 8
          %s231 = scalar_lea.vmem %s0, %s230
        $region40: #{gating_forward.1} parent=35 // pred_fallthru
          _
      $region36: #{gating_forward.1} parent=5 // pred_fallthru
        _
      %p232 = scmp.le.s32.totalorder 1, %s17
      %p233 = scmp.lt.s32.totalorder %s17, 3
      %p234 = pnand %p232, %p233
      %p235 = pneg %p234
      // Predicated region
      $region41: #{gating_forward.1} parent=5 // pred_check
        _
      $region42: #{gating_forward.1} parent=5 // pred_check_branch
        %237 = sbr.rel (%p234) target = $region44
      $region43: #{gating_forward.1} parent=5 // pred_region
        %s238 = ssub.s32 %s17, 1
        // Predicated region
        $region45: #{gating_forward.1} parent=43 // pred_check
          %p239 = pneg %p64
        $region46: #{gating_forward.1} parent=43 // pred_check_branch
          %241 = sbr.rel (%p239) target = $region48
        $region47: #{gating_forward.1} parent=43 // pred_region
          %242 = dma.done [#allocation4], 64
        $region48: #{gating_forward.1} parent=43 // pred_fallthru
          _
        // Predicated region
        $region49: #{gating_forward.1} parent=43 // pred_check
          %p243 = pneg %p85
        $region50: #{gating_forward.1} parent=43 // pred_check_branch
          %245 = sbr.rel (%p243) target = $region52
        $region51: #{gating_forward.1} parent=43 // pred_region
          %246 = dma.done [#allocation6], 16
        $region52: #{gating_forward.1} parent=43 // pred_fallthru
          _
        %247 = sfence
        %p248 = scmp.lt.s32.totalorder %s22, 1
        %s249 = scalar_select %p248, %s22, 1
        %s250 = smul.addr %s249, 8
        %s251 = smul.addr %s250, 8
        %s252 = scalar_lea.vmem %s0, %s251
        %p253 = pneg %p43
        %p254 = pneg %p40
        %p255 = pneg %p64
        %p256 = pneg %p61
        %p257 = pneg %p85
        %p258 = pneg %p82
        %p259 = pneg %p106
        %p260 = pneg %p103
        %p261 = pneg %p127
        %p262 = pneg %p124
        %p263 = pneg %p148
        %p264 = pneg %p145
        %p265 = pneg %p174
        %p266 = pneg %p171
        %s267 = sand.u32 %s161, 1
        %s268 = scalar_lea.sflag [#allocation3], %s267
        %s269 = sand.u32 %s161, 1
        %s270 = scalar_lea.vmem [#allocation7], %s269
        %p271 = scmp.lt.s32.totalorder %s22, 1
        %s272 = scalar_select %p271, %s22, 1
        %s273 = smul.addr %s272, 8
        %s274 = smul.addr %s273, 8
        %s275 = scalar_lea.vmem %s0, %s274
        %v276 = vld [vmem:[%s275] sm:$0xff]
        %v277 = vld [vmem:[%s275 + $0x8] sm:$0xff]
        %v278 = vld [vmem:[%s275 + $0x10] sm:$0xff]
        %v279 = vld [vmem:[%s275 + $0x18] sm:$0xff]
        %v280 = vld [vmem:[%s275 + $0x20] sm:$0xff]
        %v281 = vld [vmem:[%s275 + $0x28] sm:$0xff]
        %v282 = vld [vmem:[%s275 + $0x30] sm:$0xff]
        %v283 = vld [vmem:[%s275 + $0x38] sm:$0xff]
        %v284 = vld [vmem:[%s3] sm:$0xff]
        %v285 = vld [vmem:[%s3 + $0x8] sm:$0xff]
        %v286 = vld [vmem:[%s3 + $0x10] sm:$0xff]
        %v287 = vld [vmem:[%s3 + $0x18] sm:$0xff]
        %v288 = vld [vmem:[%s3 + $0x20] sm:$0xff]
        %v289 = vld [vmem:[%s3 + $0x28] sm:$0xff]
        %v290 = vld [vmem:[%s3 + $0x30] sm:$0xff]
        %v291 = vld [vmem:[%s3 + $0x38] sm:$0xff]
        %v292 = vld [vmem:[%s5] sm:$0x1]
        %s293 = sld [smem:[#allocation2]]
        %v294 = vstv %s293
        %v295 = vmul.f32 %v276, %v294
        %s296 = sld [smem:[#allocation2 + $0x1]]
        %v297 = vstv %s296
        %v298 = vmul.f32 %v277, %v297
        %v299 = vadd.f32 %v295, %v298
        %s300 = sld [smem:[#allocation2 + $0x2]]
        %v301 = vstv %s300
        %v302 = vmul.f32 %v278, %v301
        %v303 = vadd.f32 %v299, %v302
        %s304 = sld [smem:[#allocation2 + $0x3]]
        %v305 = vstv %s304
        %v306 = vmul.f32 %v279, %v305
        %v307 = vadd.f32 %v303, %v306
        %s308 = sld [smem:[#allocation2 + $0x4]]
        %v309 = vstv %s308
        %v310 = vmul.f32 %v280, %v309
        %v311 = vadd.f32 %v307, %v310
        %s312 = sld [smem:[#allocation2 + $0x5]]
        %v313 = vstv %s312
        %v314 = vmul.f32 %v281, %v313
        %v315 = vadd.f32 %v311, %v314
        %s316 = sld [smem:[#allocation2 + $0x6]]
        %v317 = vstv %s316
        %v318 = vmul.f32 %v282, %v317
        %v319 = vadd.f32 %v315, %v318
        %s320 = sld [smem:[#allocation2 + $0x7]]
        %v321 = vstv %s320
        %v322 = vmul.f32 %v283, %v321
        %v323 = vadd.f32 %v319, %v322
        %s324 = sld [smem:[#allocation5]]
        %v325 = vstv %s324
        %v326 = vadd.f32 %v323, %v325
        %vm327 = vcmask 523264
        %v328 = vsel %vm327, %v326, 0.0
        %329 = vadd.xlane.f32.xlu0 %v328
        %v330 = vpop.xlane.xlu0 %329
        %v331 = vrot.slane %v330, 4
        %v332 = vadd.f32 %v330, %v331
        %v333 = vrot.slane %v332, 2
        %v334 = vadd.f32 %v332, %v333
        %v335 = vrot.slane %v334, 1
        %v336 = vadd.f32 %v334, %v335
        %s337 = vtos %v336
        %v338 = vrcp.pop 512.0
        %s339 = vtos %v338
        %s340 = smul.f32 %s337, %s339
        %v341 = vstv %s340
        %v342 = vsub.f32 %v326, %v341
        %v343 = vmul.f32 %v342, %v342
        %v344 = vsel %vm327, %v343, 0.0
        %345 = vadd.xlane.f32.xlu0 %v344
        %v346 = vpop.xlane.xlu0 %345
        %v347 = vrot.slane %v346, 4
        %v348 = vadd.f32 %v346, %v347
        %v349 = vrot.slane %v348, 2
        %v350 = vadd.f32 %v348, %v349
        %v351 = vrot.slane %v350, 1
        %v352 = vadd.f32 %v350, %v351
        %s353 = vtos %v352
        %v354 = vrcp.pop 512.0
        %s355 = vtos %v354
        %s356 = smul.f32 %s353, %s355
        %s357 = sadd.f32 %s356, 1e-05
        %v358 = vstv %s357
        %v359 = vrsqrt.pop %v358
        %s360 = vtos %v359
        %v361 = vstv %s360
        %v362 = vmul.f32 %v342, %v361
        %v363 = vmax.f32 %v362, 0.0
        %v365 = vsel %vm327, %v363, 0
        %367 = vmatprep.subr.mxu0 0.0
        %368 = vmatpush1.msra.mxu0 0.0
        %369 = vmatprep.subr.mxu0 0.0
        %370 = vmatpush1.msra.mxu0 0.0
        %371 = vmatprep.subr.mxu0 0.0
        %372 = vmatpush1.msra.mxu0 0.0
        %373 = vmatprep.subr.mxu0 0.0
        %374 = vmatpush1.msra.mxu0 0.0
        %375 = vmatprep.subr.mxu0 0.0
        %376 = vmatpush1.msra.mxu0 0.0
        %377 = vmatprep.subr.mxu0 0.0
        %378 = vmatpush1.msra.mxu0 0.0
        %379 = vmatprep.subr.mxu0 0.0
        %380 = vmatpush1.msra.mxu0 0.0
        %381 = vmatprep.subr.mxu0 0.0
        %382 = vmatpush1.msra.mxu0 0.0
        %383 = vmatprep.subr.mxu0 0.0
        %384 = vmatpush1.msra.mxu0 %v291
        %385 = vmatprep.subr.mxu0 0.0
        %386 = vmatpush1.msra.mxu0 %v290
        %387 = vmatprep.subr.mxu0 0.0
        %388 = vmatpush1.msra.mxu0 %v289
        %389 = vmatprep.subr.mxu0 0.0
        %390 = vmatpush1.msra.mxu0 %v288
        %391 = vmatprep.subr.mxu0 0.0
        %392 = vmatpush1.msra.mxu0 %v287
        %393 = vmatprep.subr.mxu0 0.0
        %394 = vmatpush1.msra.mxu0 %v286
        %395 = vmatprep.subr.mxu0 0.0
        %396 = vmatpush1.msra.mxu0 %v285
        %397 = vmatprep.subr.mxu0 0.0
        %398 = vmatpush1.msra.mxu0 %v284
        %399 = vmatprep.subr.mxu0 0.0
        %400 = vmatpush2.msra.mxu0 0.0
        %401 = vmatprep.subr.mxu0 0.0
        %402 = vmatpush2.msra.mxu0 0.0
        %403 = vmatprep.subr.mxu0 0.0
        %404 = vmatpush2.msra.mxu0 0.0
        %405 = vmatprep.subr.mxu0 0.0
        %406 = vmatpush2.msra.mxu0 0.0
        %407 = vmatprep.subr.mxu0 0.0
        %408 = vmatpush2.msra.mxu0 0.0
        %409 = vmatprep.subr.mxu0 0.0
        %410 = vmatpush2.msra.mxu0 0.0
        %411 = vmatprep.subr.mxu0 0.0
        %412 = vmatpush2.msra.mxu0 0.0
        %413 = vmatprep.subr.mxu0 0.0
        %414 = vmatpush2.msra.mxu0 0.0
        %415 = vmatprep.subr.mxu0 0.0
        %416 = vmatpush2.msra.mxu0 0.0
        %417 = vmatprep.subr.mxu0 0.0
        %418 = vmatpush2.msra.mxu0 0.0
        %419 = vmatprep.subr.mxu0 0.0
        %420 = vmatpush2.msra.mxu0 0.0
        %421 = vmatprep.subr.mxu0 0.0
        %422 = vmatpush2.msra.mxu0 0.0
        %423 = vmatprep.subr.mxu0 0.0
        %424 = vmatpush2.msra.mxu0 0.0
        %425 = vmatprep.subr.mxu0 0.0
        %426 = vmatpush2.msra.mxu0 0.0
        %427 = vmatprep.subr.mxu0 0.0
        %428 = vmatpush2.msra.mxu0 0.0
        %429 = vmatprep.subr.mxu0 0.0
        %430 = vmatpush2.msra.mxu0 0.0
        %431 = vmatprep.mubr.f32.mxu0 0.0
        %432 = vmatmul.mubr.f32.gmra.mxu0 %v365
        %v433 = vpop.f32.mrf.mxu0
        %v434 = vadd.f32 0.0, %v433
        %v435 = vpop.f32.mrf.mxu0
        %436 = vdwg.mxu0
        %vm437 = vcmask 123904
        %v438 = vsel %vm437, %v434, 0.0
        %v439 = vrot.slane %v438, 4
        %v440 = vadd.f32 %v438, %v439
        %v441 = vrot.slane %v440, 2
        %v442 = vadd.f32 %v440, %v441
        %v443 = vrot.slane %v442, 1
        %v444 = vadd.f32 %v442, %v443
        %v445 = vrcp.pop 2.0
        %v446 = vmul.f32 %v444, %v445
        %v447 = vld [vmem:[%s4] sm:$0xff]
        %v448 = vld [vmem:[%s4 + $0x8] sm:$0xff]
        %vm449 = vcmask 130048
        %v451 = vsel %vm449, %v446, 0
        %453 = vmatprep.subr.mxu0 0.0
        %454 = vmatpush1.msra.mxu0 0.0
        %455 = vmatprep.subr.mxu0 0.0
        %456 = vmatpush1.msra.mxu0 0.0
        %457 = vmatprep.subr.mxu0 0.0
        %458 = vmatpush1.msra.mxu0 0.0
        %459 = vmatprep.subr.mxu0 0.0
        %460 = vmatpush1.msra.mxu0 0.0
        %461 = vmatprep.subr.mxu0 0.0
        %462 = vmatpush1.msra.mxu0 0.0
        %463 = vmatprep.subr.mxu0 0.0
        %464 = vmatpush1.msra.mxu0 0.0
        %465 = vmatprep.subr.mxu0 0.0
        %466 = vmatpush1.msra.mxu0 0.0
        %467 = vmatprep.subr.mxu0 0.0
        %468 = vmatpush1.msra.mxu0 0.0
        %469 = vmatprep.subr.mxu0 0.0
        %470 = vmatpush1.msra.mxu0 0.0
        %471 = vmatprep.subr.mxu0 0.0
        %472 = vmatpush1.msra.mxu0 0.0
        %473 = vmatprep.subr.mxu0 0.0
        %474 = vmatpush1.msra.mxu0 0.0
        %475 = vmatprep.subr.mxu0 0.0
        %476 = vmatpush1.msra.mxu0 0.0
        %477 = vmatprep.subr.mxu0 0.0
        %478 = vmatpush1.msra.mxu0 0.0
        %479 = vmatprep.subr.mxu0 0.0
        %480 = vmatpush1.msra.mxu0 0.0
        %481 = vmatprep.subr.mxu0 0.0
        %482 = vmatpush1.msra.mxu0 %v448
        %483 = vmatprep.subr.mxu0 0.0
        %484 = vmatpush1.msra.mxu0 %v447
        %485 = vmatprep.subr.mxu0 0.0
        %486 = vmatpush2.msra.mxu0 0.0
        %487 = vmatprep.subr.mxu0 0.0
        %488 = vmatpush2.msra.mxu0 0.0
        %489 = vmatprep.subr.mxu0 0.0
        %490 = vmatpush2.msra.mxu0 0.0
        %491 = vmatprep.subr.mxu0 0.0
        %492 = vmatpush2.msra.mxu0 0.0
        %493 = vmatprep.subr.mxu0 0.0
        %494 = vmatpush2.msra.mxu0 0.0
        %495 = vmatprep.subr.mxu0 0.0
        %496 = vmatpush2.msra.mxu0 0.0
        %497 = vmatprep.subr.mxu0 0.0
        %498 = vmatpush2.msra.mxu0 0.0
        %499 = vmatprep.subr.mxu0 0.0
        %500 = vmatpush2.msra.mxu0 0.0
        %501 = vmatprep.subr.mxu0 0.0
        %502 = vmatpush2.msra.mxu0 0.0
        %503 = vmatprep.subr.mxu0 0.0
        %504 = vmatpush2.msra.mxu0 0.0
        %505 = vmatprep.subr.mxu0 0.0
        %506 = vmatpush2.msra.mxu0 0.0
        %507 = vmatprep.subr.mxu0 0.0
        %508 = vmatpush2.msra.mxu0 0.0
        %509 = vmatprep.subr.mxu0 0.0
        %510 = vmatpush2.msra.mxu0 0.0
        %511 = vmatprep.subr.mxu0 0.0
        %512 = vmatpush2.msra.mxu0 0.0
        %513 = vmatprep.subr.mxu0 0.0
        %514 = vmatpush2.msra.mxu0 0.0
        %515 = vmatprep.subr.mxu0 0.0
        %516 = vmatpush2.msra.mxu0 0.0
        %517 = vmatprep.mubr.f32.mxu0 0.0
        %518 = vmatmul.mubr.f32.gmra.mxu0 %v451
        %v519 = vpop.f32.mrf.mxu0
        %v520 = vadd.f32 0.0, %v519
        %v521 = vpop.f32.mrf.mxu0
        %522 = vdwg.mxu0
        %v523 = vadd.f32 %v292, %v520
        %v525 = vrot.slane %v434, 2
        %v527 = vsel %vm437, %v525, 0.0
        %v528 = vrot.slane %v527, 4
        %v529 = vadd.f32 %v527, %v528
        %v530 = vrot.slane %v529, 2
        %v531 = vadd.f32 %v529, %v530
        %v532 = vrot.slane %v531, 1
        %v533 = vadd.f32 %v531, %v532
        %v534 = vmul.f32 %v533, %v445
        %v535 = vld [vmem:[%s4 + $0x10] sm:$0xff]
        %v536 = vld [vmem:[%s4 + $0x18] sm:$0xff]
        %v538 = vsel %vm449, %v534, 0
        %540 = vmatprep.subr.mxu0 0.0
        %541 = vmatpush1.msra.mxu0 0.0
        %542 = vmatprep.subr.mxu0 0.0
        %543 = vmatpush1.msra.mxu0 0.0
        %544 = vmatprep.subr.mxu0 0.0
        %545 = vmatpush1.msra.mxu0 0.0
        %546 = vmatprep.subr.mxu0 0.0
        %547 = vmatpush1.msra.mxu0 0.0
        %548 = vmatprep.subr.mxu0 0.0
        %549 = vmatpush1.msra.mxu0 0.0
        %550 = vmatprep.subr.mxu0 0.0
        %551 = vmatpush1.msra.mxu0 0.0
        %552 = vmatprep.subr.mxu0 0.0
        %553 = vmatpush1.msra.mxu0 0.0
        %554 = vmatprep.subr.mxu0 0.0
        %555 = vmatpush1.msra.mxu0 0.0
        %556 = vmatprep.subr.mxu0 0.0
        %557 = vmatpush1.msra.mxu0 0.0
        %558 = vmatprep.subr.mxu0 0.0
        %559 = vmatpush1.msra.mxu0 0.0
        %560 = vmatprep.subr.mxu0 0.0
        %561 = vmatpush1.msra.mxu0 0.0
        %562 = vmatprep.subr.mxu0 0.0
        %563 = vmatpush1.msra.mxu0 0.0
        %564 = vmatprep.subr.mxu0 0.0
        %565 = vmatpush1.msra.mxu0 0.0
        %566 = vmatprep.subr.mxu0 0.0
        %567 = vmatpush1.msra.mxu0 0.0
        %568 = vmatprep.subr.mxu0 0.0
        %569 = vmatpush1.msra.mxu0 %v536
        %570 = vmatprep.subr.mxu0 0.0
        %571 = vmatpush1.msra.mxu0 %v535
        %572 = vmatprep.subr.mxu0 0.0
        %573 = vmatpush2.msra.mxu0 0.0
        %574 = vmatprep.subr.mxu0 0.0
        %575 = vmatpush2.msra.mxu0 0.0
        %576 = vmatprep.subr.mxu0 0.0
        %577 = vmatpush2.msra.mxu0 0.0
        %578 = vmatprep.subr.mxu0 0.0
        %579 = vmatpush2.msra.mxu0 0.0
        %580 = vmatprep.subr.mxu0 0.0
        %581 = vmatpush2.msra.mxu0 0.0
        %582 = vmatprep.subr.mxu0 0.0
        %583 = vmatpush2.msra.mxu0 0.0
        %584 = vmatprep.subr.mxu0 0.0
        %585 = vmatpush2.msra.mxu0 0.0
        %586 = vmatprep.subr.mxu0 0.0
        %587 = vmatpush2.msra.mxu0 0.0
        %588 = vmatprep.subr.mxu0 0.0
        %589 = vmatpush2.msra.mxu0 0.0
        %590 = vmatprep.subr.mxu0 0.0
        %591 = vmatpush2.msra.mxu0 0.0
        %592 = vmatprep.subr.mxu0 0.0
        %593 = vmatpush2.msra.mxu0 0.0
        %594 = vmatprep.subr.mxu0 0.0
        %595 = vmatpush2.msra.mxu0 0.0
        %596 = vmatprep.subr.mxu0 0.0
        %597 = vmatpush2.msra.mxu0 0.0
        %598 = vmatprep.subr.mxu0 0.0
        %599 = vmatpush2.msra.mxu0 0.0
        %600 = vmatprep.subr.mxu0 0.0
        %601 = vmatpush2.msra.mxu0 0.0
        %602 = vmatprep.subr.mxu0 0.0
        %603 = vmatpush2.msra.mxu0 0.0
        %604 = vmatprep.mubr.f32.mxu0 0.0
        %605 = vmatmul.mubr.f32.gmra.mxu0 %v538
        %v606 = vpop.f32.mrf.mxu0
        %v607 = vadd.f32 0.0, %v606
        %v608 = vpop.f32.mrf.mxu0
        %609 = vdwg.mxu0
        %v610 = vadd.f32 %v523, %v607
        %v611 = vrot.slane %v434, 4
        %v613 = vsel %vm437, %v611, 0.0
        %v614 = vrot.slane %v613, 4
        %v615 = vadd.f32 %v613, %v614
        %v616 = vrot.slane %v615, 2
        %v617 = vadd.f32 %v615, %v616
        %v618 = vrot.slane %v617, 1
        %v619 = vadd.f32 %v617, %v618
        %v620 = vmul.f32 %v619, %v445
        %v621 = vld [vmem:[%s4 + $0x20] sm:$0xff]
        %v622 = vld [vmem:[%s4 + $0x28] sm:$0xff]
        %v624 = vsel %vm449, %v620, 0
        %626 = vmatprep.subr.mxu0 0.0
        %627 = vmatpush1.msra.mxu0 0.0
        %628 = vmatprep.subr.mxu0 0.0
        %629 = vmatpush1.msra.mxu0 0.0
        %630 = vmatprep.subr.mxu0 0.0
        %631 = vmatpush1.msra.mxu0 0.0
        %632 = vmatprep.subr.mxu0 0.0
        %633 = vmatpush1.msra.mxu0 0.0
        %634 = vmatprep.subr.mxu0 0.0
        %635 = vmatpush1.msra.mxu0 0.0
        %636 = vmatprep.subr.mxu0 0.0
        %637 = vmatpush1.msra.mxu0 0.0
        %638 = vmatprep.subr.mxu0 0.0
        %639 = vmatpush1.msra.mxu0 0.0
        %640 = vmatprep.subr.mxu0 0.0
        %641 = vmatpush1.msra.mxu0 0.0
        %642 = vmatprep.subr.mxu0 0.0
        %643 = vmatpush1.msra.mxu0 0.0
        %644 = vmatprep.subr.mxu0 0.0
        %645 = vmatpush1.msra.mxu0 0.0
        %646 = vmatprep.subr.mxu0 0.0
        %647 = vmatpush1.msra.mxu0 0.0
        %648 = vmatprep.subr.mxu0 0.0
        %649 = vmatpush1.msra.mxu0 0.0
        %650 = vmatprep.subr.mxu0 0.0
        %651 = vmatpush1.msra.mxu0 0.0
        %652 = vmatprep.subr.mxu0 0.0
        %653 = vmatpush1.msra.mxu0 0.0
        %654 = vmatprep.subr.mxu0 0.0
        %655 = vmatpush1.msra.mxu0 %v622
        %656 = vmatprep.subr.mxu0 0.0
        %657 = vmatpush1.msra.mxu0 %v621
        %658 = vmatprep.subr.mxu0 0.0
        %659 = vmatpush2.msra.mxu0 0.0
        %660 = vmatprep.subr.mxu0 0.0
        %661 = vmatpush2.msra.mxu0 0.0
        %662 = vmatprep.subr.mxu0 0.0
        %663 = vmatpush2.msra.mxu0 0.0
        %664 = vmatprep.subr.mxu0 0.0
        %665 = vmatpush2.msra.mxu0 0.0
        %666 = vmatprep.subr.mxu0 0.0
        %667 = vmatpush2.msra.mxu0 0.0
        %668 = vmatprep.subr.mxu0 0.0
        %669 = vmatpush2.msra.mxu0 0.0
        %670 = vmatprep.subr.mxu0 0.0
        %671 = vmatpush2.msra.mxu0 0.0
        %672 = vmatprep.subr.mxu0 0.0
        %673 = vmatpush2.msra.mxu0 0.0
        %674 = vmatprep.subr.mxu0 0.0
        %675 = vmatpush2.msra.mxu0 0.0
        %676 = vmatprep.subr.mxu0 0.0
        %677 = vmatpush2.msra.mxu0 0.0
        %678 = vmatprep.subr.mxu0 0.0
        %679 = vmatpush2.msra.mxu0 0.0
        %680 = vmatprep.subr.mxu0 0.0
        %681 = vmatpush2.msra.mxu0 0.0
        %682 = vmatprep.subr.mxu0 0.0
        %683 = vmatpush2.msra.mxu0 0.0
        %684 = vmatprep.subr.mxu0 0.0
        %685 = vmatpush2.msra.mxu0 0.0
        %686 = vmatprep.subr.mxu0 0.0
        %687 = vmatpush2.msra.mxu0 0.0
        %688 = vmatprep.subr.mxu0 0.0
        %689 = vmatpush2.msra.mxu0 0.0
        %690 = vmatprep.mubr.f32.mxu0 0.0
        %691 = vmatmul.mubr.f32.gmra.mxu0 %v624
        %v692 = vpop.f32.mrf.mxu0
        %v693 = vadd.f32 0.0, %v692
        %v694 = vpop.f32.mrf.mxu0
        %695 = vdwg.mxu0
        %v696 = vadd.f32 %v610, %v693
        %v697 = vrot.slane %v434, 6
        %v699 = vsel %vm437, %v697, 0.0
        %v700 = vrot.slane %v699, 4
        %v701 = vadd.f32 %v699, %v700
        %v702 = vrot.slane %v701, 2
        %v703 = vadd.f32 %v701, %v702
        %v704 = vrot.slane %v703, 1
        %v705 = vadd.f32 %v703, %v704
        %v706 = vmul.f32 %v705, %v445
        %v707 = vld [vmem:[%s4 + $0x30] sm:$0xff]
        %v708 = vld [vmem:[%s4 + $0x38] sm:$0xff]
        %v710 = vsel %vm449, %v706, 0
        %712 = vmatprep.subr.mxu0 0.0
        %713 = vmatpush1.msra.mxu0 0.0
        %714 = vmatprep.subr.mxu0 0.0
        %715 = vmatpush1.msra.mxu0 0.0
        %716 = vmatprep.subr.mxu0 0.0
        %717 = vmatpush1.msra.mxu0 0.0
        %718 = vmatprep.subr.mxu0 0.0
        %719 = vmatpush1.msra.mxu0 0.0
        %720 = vmatprep.subr.mxu0 0.0
        %721 = vmatpush1.msra.mxu0 0.0
        %722 = vmatprep.subr.mxu0 0.0
        %723 = vmatpush1.msra.mxu0 0.0
        %724 = vmatprep.subr.mxu0 0.0
        %725 = vmatpush1.msra.mxu0 0.0
        %726 = vmatprep.subr.mxu0 0.0
        %727 = vmatpush1.msra.mxu0 0.0
        %728 = vmatprep.subr.mxu0 0.0
        %729 = vmatpush1.msra.mxu0 0.0
        %730 = vmatprep.subr.mxu0 0.0
        %731 = vmatpush1.msra.mxu0 0.0
        %732 = vmatprep.subr.mxu0 0.0
        %733 = vmatpush1.msra.mxu0 0.0
        %734 = vmatprep.subr.mxu0 0.0
        %735 = vmatpush1.msra.mxu0 0.0
        %736 = vmatprep.subr.mxu0 0.0
        %737 = vmatpush1.msra.mxu0 0.0
        %738 = vmatprep.subr.mxu0 0.0
        %739 = vmatpush1.msra.mxu0 0.0
        %740 = vmatprep.subr.mxu0 0.0
        %741 = vmatpush1.msra.mxu0 %v708
        %742 = vmatprep.subr.mxu0 0.0
        %743 = vmatpush1.msra.mxu0 %v707
        %744 = vmatprep.subr.mxu0 0.0
        %745 = vmatpush2.msra.mxu0 0.0
        %746 = vmatprep.subr.mxu0 0.0
        %747 = vmatpush2.msra.mxu0 0.0
        %748 = vmatprep.subr.mxu0 0.0
        %749 = vmatpush2.msra.mxu0 0.0
        %750 = vmatprep.subr.mxu0 0.0
        %751 = vmatpush2.msra.mxu0 0.0
        %752 = vmatprep.subr.mxu0 0.0
        %753 = vmatpush2.msra.mxu0 0.0
        %754 = vmatprep.subr.mxu0 0.0
        %755 = vmatpush2.msra.mxu0 0.0
        %756 = vmatprep.subr.mxu0 0.0
        %757 = vmatpush2.msra.mxu0 0.0
        %758 = vmatprep.subr.mxu0 0.0
        %759 = vmatpush2.msra.mxu0 0.0
        %760 = vmatprep.subr.mxu0 0.0
        %761 = vmatpush2.msra.mxu0 0.0
        %762 = vmatprep.subr.mxu0 0.0
        %763 = vmatpush2.msra.mxu0 0.0
        %764 = vmatprep.subr.mxu0 0.0
        %765 = vmatpush2.msra.mxu0 0.0
        %766 = vmatprep.subr.mxu0 0.0
        %767 = vmatpush2.msra.mxu0 0.0
        %768 = vmatprep.subr.mxu0 0.0
        %769 = vmatpush2.msra.mxu0 0.0
        %770 = vmatprep.subr.mxu0 0.0
        %771 = vmatpush2.msra.mxu0 0.0
        %772 = vmatprep.subr.mxu0 0.0
        %773 = vmatpush2.msra.mxu0 0.0
        %774 = vmatprep.subr.mxu0 0.0
        %775 = vmatpush2.msra.mxu0 0.0
        %776 = vmatprep.mubr.f32.mxu0 0.0
        %777 = vmatmul.mubr.f32.gmra.mxu0 %v710
        %v778 = vpop.f32.mrf.mxu0
        %v779 = vadd.f32 0.0, %v778
        %v780 = vpop.f32.mrf.mxu0
        %781 = vdwg.mxu0
        %v782 = vadd.f32 %v696, %v779
        %s783 = sld [smem:[#allocation2 + $0x80]]
        %v784 = vstv %s783
        %v785 = vmul.f32 %v276, %v784
        %s786 = sld [smem:[#allocation2 + $0x81]]
        %v787 = vstv %s786
        %v788 = vmul.f32 %v277, %v787
        %v789 = vadd.f32 %v785, %v788
        %s790 = sld [smem:[#allocation2 + $0x82]]
        %v791 = vstv %s790
        %v792 = vmul.f32 %v278, %v791
        %v793 = vadd.f32 %v789, %v792
        %s794 = sld [smem:[#allocation2 + $0x83]]
        %v795 = vstv %s794
        %v796 = vmul.f32 %v279, %v795
        %v797 = vadd.f32 %v793, %v796
        %s798 = sld [smem:[#allocation2 + $0x84]]
        %v799 = vstv %s798
        %v800 = vmul.f32 %v280, %v799
        %v801 = vadd.f32 %v797, %v800
        %s802 = sld [smem:[#allocation2 + $0x85]]
        %v803 = vstv %s802
        %v804 = vmul.f32 %v281, %v803
        %v805 = vadd.f32 %v801, %v804
        %s806 = sld [smem:[#allocation2 + $0x86]]
        %v807 = vstv %s806
        %v808 = vmul.f32 %v282, %v807
        %v809 = vadd.f32 %v805, %v808
        %s810 = sld [smem:[#allocation2 + $0x87]]
        %v811 = vstv %s810
        %v812 = vmul.f32 %v283, %v811
        %v813 = vadd.f32 %v809, %v812
        %s814 = sld [smem:[#allocation5 + $0x1]]
        %v815 = vstv %s814
        %v816 = vadd.f32 %v813, %v815
        %v817 = vsel %vm327, %v816, 0.0
        %818 = vadd.xlane.f32.xlu0 %v817
        %v819 = vpop.xlane.xlu0 %818
        %v820 = vrot.slane %v819, 4
        %v821 = vadd.f32 %v819, %v820
        %v822 = vrot.slane %v821, 2
        %v823 = vadd.f32 %v821, %v822
        %v824 = vrot.slane %v823, 1
        %v825 = vadd.f32 %v823, %v824
        %s826 = vtos %v825
        %v827 = vrcp.pop 512.0
        %s828 = vtos %v827
        %s829 = smul.f32 %s826, %s828
        %v830 = vstv %s829
        %v831 = vsub.f32 %v816, %v830
        %v832 = vmul.f32 %v831, %v831
        %v833 = vsel %vm327, %v832, 0.0
        %834 = vadd.xlane.f32.xlu0 %v833
        %v835 = vpop.xlane.xlu0 %834
        %v836 = vrot.slane %v835, 4
        %v837 = vadd.f32 %v835, %v836
        %v838 = vrot.slane %v837, 2
        %v839 = vadd.f32 %v837, %v838
        %v840 = vrot.slane %v839, 1
        %v841 = vadd.f32 %v839, %v840
        %s842 = vtos %v841
        %v843 = vrcp.pop 512.0
        %s844 = vtos %v843
        %s845 = smul.f32 %s842, %s844
        %s846 = sadd.f32 %s845, 1e-05
        %v847 = vstv %s846
        %v848 = vrsqrt.pop %v847
        %s849 = vtos %v848
        %v850 = vstv %s849
        %v851 = vmul.f32 %v831, %v850
        %v852 = vmax.f32 %v851, 0.0
        %v854 = vsel %vm327, %v852, 0
        %856 = vmatprep.subr.mxu0 0.0
        %857 = vmatpush1.msra.mxu0 0.0
        %858 = vmatprep.subr.mxu0 0.0
        %859 = vmatpush1.msra.mxu0 0.0
        %860 = vmatprep.subr.mxu0 0.0
        %861 = vmatpush1.msra.mxu0 0.0
        %862 = vmatprep.subr.mxu0 0.0
        %863 = vmatpush1.msra.mxu0 0.0
        %864 = vmatprep.subr.mxu0 0.0
        %865 = vmatpush1.msra.mxu0 0.0
        %866 = vmatprep.subr.mxu0 0.0
        %867 = vmatpush1.msra.mxu0 0.0
        %868 = vmatprep.subr.mxu0 0.0
        %869 = vmatpush1.msra.mxu0 0.0
        %870 = vmatprep.subr.mxu0 0.0
        %871 = vmatpush1.msra.mxu0 0.0
        %872 = vmatprep.subr.mxu0 0.0
        %873 = vmatpush1.msra.mxu0 %v291
        %874 = vmatprep.subr.mxu0 0.0
        %875 = vmatpush1.msra.mxu0 %v290
        %876 = vmatprep.subr.mxu0 0.0
        %877 = vmatpush1.msra.mxu0 %v289
        %878 = vmatprep.subr.mxu0 0.0
        %879 = vmatpush1.msra.mxu0 %v288
        %880 = vmatprep.subr.mxu0 0.0
        %881 = vmatpush1.msra.mxu0 %v287
        %882 = vmatprep.subr.mxu0 0.0
        %883 = vmatpush1.msra.mxu0 %v286
        %884 = vmatprep.subr.mxu0 0.0
        %885 = vmatpush1.msra.mxu0 %v285
        %886 = vmatprep.subr.mxu0 0.0
        %887 = vmatpush1.msra.mxu0 %v284
        %888 = vmatprep.subr.mxu0 0.0
        %889 = vmatpush2.msra.mxu0 0.0
        %890 = vmatprep.subr.mxu0 0.0
        %891 = vmatpush2.msra.mxu0 0.0
        %892 = vmatprep.subr.mxu0 0.0
        %893 = vmatpush2.msra.mxu0 0.0
        %894 = vmatprep.subr.mxu0 0.0
        %895 = vmatpush2.msra.mxu0 0.0
        %896 = vmatprep.subr.mxu0 0.0
        %897 = vmatpush2.msra.mxu0 0.0
        %898 = vmatprep.subr.mxu0 0.0
        %899 = vmatpush2.msra.mxu0 0.0
        %900 = vmatprep.subr.mxu0 0.0
        %901 = vmatpush2.msra.mxu0 0.0
        %902 = vmatprep.subr.mxu0 0.0
        %903 = vmatpush2.msra.mxu0 0.0
        %904 = vmatprep.subr.mxu0 0.0
        %905 = vmatpush2.msra.mxu0 0.0
        %906 = vmatprep.subr.mxu0 0.0
        %907 = vmatpush2.msra.mxu0 0.0
        %908 = vmatprep.subr.mxu0 0.0
        %909 = vmatpush2.msra.mxu0 0.0
        %910 = vmatprep.subr.mxu0 0.0
        %911 = vmatpush2.msra.mxu0 0.0
        %912 = vmatprep.subr.mxu0 0.0
        %913 = vmatpush2.msra.mxu0 0.0
        %914 = vmatprep.subr.mxu0 0.0
        %915 = vmatpush2.msra.mxu0 0.0
        %916 = vmatprep.subr.mxu0 0.0
        %917 = vmatpush2.msra.mxu0 0.0
        %918 = vmatprep.subr.mxu0 0.0
        %919 = vmatpush2.msra.mxu0 0.0
        %920 = vmatprep.mubr.f32.mxu0 0.0
        %921 = vmatmul.mubr.f32.gmra.mxu0 %v854
        %v922 = vpop.f32.mrf.mxu0
        %v923 = vadd.f32 0.0, %v922
        %v924 = vpop.f32.mrf.mxu0
        %925 = vdwg.mxu0
        %v926 = vsel %vm437, %v923, 0.0
        %v927 = vrot.slane %v926, 4
        %v928 = vadd.f32 %v926, %v927
        %v929 = vrot.slane %v928, 2
        %v930 = vadd.f32 %v928, %v929
        %v931 = vrot.slane %v930, 1
        %v932 = vadd.f32 %v930, %v931
        %v933 = vmul.f32 %v932, %v445
        %v934 = vld [vmem:[%s4 + $0x40] sm:$0xff]
        %v935 = vld [vmem:[%s4 + $0x48] sm:$0xff]
        %v937 = vsel %vm449, %v933, 0
        %939 = vmatprep.subr.mxu0 0.0
        %940 = vmatpush1.msra.mxu0 0.0
        %941 = vmatprep.subr.mxu0 0.0
        %942 = vmatpush1.msra.mxu0 0.0
        %943 = vmatprep.subr.mxu0 0.0
        %944 = vmatpush1.msra.mxu0 0.0
        %945 = vmatprep.subr.mxu0 0.0
        %946 = vmatpush1.msra.mxu0 0.0
        %947 = vmatprep.subr.mxu0 0.0
        %948 = vmatpush1.msra.mxu0 0.0
        %949 = vmatprep.subr.mxu0 0.0
        %950 = vmatpush1.msra.mxu0 0.0
        %951 = vmatprep.subr.mxu0 0.0
        %952 = vmatpush1.msra.mxu0 0.0
        %953 = vmatprep.subr.mxu0 0.0
        %954 = vmatpush1.msra.mxu0 0.0
        %955 = vmatprep.subr.mxu0 0.0
        %956 = vmatpush1.msra.mxu0 0.0
        %957 = vmatprep.subr.mxu0 0.0
        %958 = vmatpush1.msra.mxu0 0.0
        %959 = vmatprep.subr.mxu0 0.0
        %960 = vmatpush1.msra.mxu0 0.0
        %961 = vmatprep.subr.mxu0 0.0
        %962 = vmatpush1.msra.mxu0 0.0
        %963 = vmatprep.subr.mxu0 0.0
        %964 = vmatpush1.msra.mxu0 0.0
        %965 = vmatprep.subr.mxu0 0.0
        %966 = vmatpush1.msra.mxu0 0.0
        %967 = vmatprep.subr.mxu0 0.0
        %968 = vmatpush1.msra.mxu0 %v935
        %969 = vmatprep.subr.mxu0 0.0
        %970 = vmatpush1.msra.mxu0 %v934
        %971 = vmatprep.subr.mxu0 0.0
        %972 = vmatpush2.msra.mxu0 0.0
        %973 = vmatprep.subr.mxu0 0.0
        %974 = vmatpush2.msra.mxu0 0.0
        %975 = vmatprep.subr.mxu0 0.0
        %976 = vmatpush2.msra.mxu0 0.0
        %977 = vmatprep.subr.mxu0 0.0
        %978 = vmatpush2.msra.mxu0 0.0
        %979 = vmatprep.subr.mxu0 0.0
        %980 = vmatpush2.msra.mxu0 0.0
        %981 = vmatprep.subr.mxu0 0.0
        %982 = vmatpush2.msra.mxu0 0.0
        %983 = vmatprep.subr.mxu0 0.0
        %984 = vmatpush2.msra.mxu0 0.0
        %985 = vmatprep.subr.mxu0 0.0
        %986 = vmatpush2.msra.mxu0 0.0
        %987 = vmatprep.subr.mxu0 0.0
        %988 = vmatpush2.msra.mxu0 0.0
        %989 = vmatprep.subr.mxu0 0.0
        %990 = vmatpush2.msra.mxu0 0.0
        %991 = vmatprep.subr.mxu0 0.0
        %992 = vmatpush2.msra.mxu0 0.0
        %993 = vmatprep.subr.mxu0 0.0
        %994 = vmatpush2.msra.mxu0 0.0
        %995 = vmatprep.subr.mxu0 0.0
        %996 = vmatpush2.msra.mxu0 0.0
        %997 = vmatprep.subr.mxu0 0.0
        %998 = vmatpush2.msra.mxu0 0.0
        %999 = vmatprep.subr.mxu0 0.0
        %1000 = vmatpush2.msra.mxu0 0.0
        %1001 = vmatprep.subr.mxu0 0.0
        %1002 = vmatpush2.msra.mxu0 0.0
        %1003 = vmatprep.mubr.f32.mxu0 0.0
        %1004 = vmatmul.mubr.f32.gmra.mxu0 %v937
        %v1005 = vpop.f32.mrf.mxu0
        %v1006 = vadd.f32 0.0, %v1005
        %v1007 = vpop.f32.mrf.mxu0
        %1008 = vdwg.mxu0
        %v1009 = vadd.f32 %v782, %v1006
        %v1011 = vrot.slane %v923, 2
        %v1013 = vsel %vm437, %v1011, 0.0
        %v1014 = vrot.slane %v1013, 4
        %v1015 = vadd.f32 %v1013, %v1014
        %v1016 = vrot.slane %v1015, 2
        %v1017 = vadd.f32 %v1015, %v1016
        %v1018 = vrot.slane %v1017, 1
        %v1019 = vadd.f32 %v1017, %v1018
        %v1020 = vmul.f32 %v1019, %v445
        %v1021 = vld [vmem:[%s4 + $0x50] sm:$0xff]
        %v1022 = vld [vmem:[%s4 + $0x58] sm:$0xff]
        %v1024 = vsel %vm449, %v1020, 0
        %1026 = vmatprep.subr.mxu0 0.0
        %1027 = vmatpush1.msra.mxu0 0.0
        %1028 = vmatprep.subr.mxu0 0.0
        %1029 = vmatpush1.msra.mxu0 0.0
        %1030 = vmatprep.subr.mxu0 0.0
        %1031 = vmatpush1.msra.mxu0 0.0
        %1032 = vmatprep.subr.mxu0 0.0
        %1033 = vmatpush1.msra.mxu0 0.0
        %1034 = vmatprep.subr.mxu0 0.0
        %1035 = vmatpush1.msra.mxu0 0.0
        %1036 = vmatprep.subr.mxu0 0.0
        %1037 = vmatpush1.msra.mxu0 0.0
        %1038 = vmatprep.subr.mxu0 0.0
        %1039 = vmatpush1.msra.mxu0 0.0
        %1040 = vmatprep.subr.mxu0 0.0
        %1041 = vmatpush1.msra.mxu0 0.0
        %1042 = vmatprep.subr.mxu0 0.0
        %1043 = vmatpush1.msra.mxu0 0.0
        %1044 = vmatprep.subr.mxu0 0.0
        %1045 = vmatpush1.msra.mxu0 0.0
        %1046 = vmatprep.subr.mxu0 0.0
        %1047 = vmatpush1.msra.mxu0 0.0
        %1048 = vmatprep.subr.mxu0 0.0
        %1049 = vmatpush1.msra.mxu0 0.0
        %1050 = vmatprep.subr.mxu0 0.0
        %1051 = vmatpush1.msra.mxu0 0.0
        %1052 = vmatprep.subr.mxu0 0.0
        %1053 = vmatpush1.msra.mxu0 0.0
        %1054 = vmatprep.subr.mxu0 0.0
        %1055 = vmatpush1.msra.mxu0 %v1022
        %1056 = vmatprep.subr.mxu0 0.0
        %1057 = vmatpush1.msra.mxu0 %v1021
        %1058 = vmatprep.subr.mxu0 0.0
        %1059 = vmatpush2.msra.mxu0 0.0
        %1060 = vmatprep.subr.mxu0 0.0
        %1061 = vmatpush2.msra.mxu0 0.0
        %1062 = vmatprep.subr.mxu0 0.0
        %1063 = vmatpush2.msra.mxu0 0.0
        %1064 = vmatprep.subr.mxu0 0.0
        %1065 = vmatpush2.msra.mxu0 0.0
        %1066 = vmatprep.subr.mxu0 0.0
        %1067 = vmatpush2.msra.mxu0 0.0
        %1068 = vmatprep.subr.mxu0 0.0
        %1069 = vmatpush2.msra.mxu0 0.0
        %1070 = vmatprep.subr.mxu0 0.0
        %1071 = vmatpush2.msra.mxu0 0.0
        %1072 = vmatprep.subr.mxu0 0.0
        %1073 = vmatpush2.msra.mxu0 0.0
        %1074 = vmatprep.subr.mxu0 0.0
        %1075 = vmatpush2.msra.mxu0 0.0
        %1076 = vmatprep.subr.mxu0 0.0
        %1077 = vmatpush2.msra.mxu0 0.0
        %1078 = vmatprep.subr.mxu0 0.0
        %1079 = vmatpush2.msra.mxu0 0.0
        %1080 = vmatprep.subr.mxu0 0.0
        %1081 = vmatpush2.msra.mxu0 0.0
        %1082 = vmatprep.subr.mxu0 0.0
        %1083 = vmatpush2.msra.mxu0 0.0
        %1084 = vmatprep.subr.mxu0 0.0
        %1085 = vmatpush2.msra.mxu0 0.0
        %1086 = vmatprep.subr.mxu0 0.0
        %1087 = vmatpush2.msra.mxu0 0.0
        %1088 = vmatprep.subr.mxu0 0.0
        %1089 = vmatpush2.msra.mxu0 0.0
        %1090 = vmatprep.mubr.f32.mxu0 0.0
        %1091 = vmatmul.mubr.f32.gmra.mxu0 %v1024
        %v1092 = vpop.f32.mrf.mxu0
        %v1093 = vadd.f32 0.0, %v1092
        %v1094 = vpop.f32.mrf.mxu0
        %1095 = vdwg.mxu0
        %v1096 = vadd.f32 %v1009, %v1093
        %v1097 = vrot.slane %v923, 4
        %v1099 = vsel %vm437, %v1097, 0.0
        %v1100 = vrot.slane %v1099, 4
        %v1101 = vadd.f32 %v1099, %v1100
        %v1102 = vrot.slane %v1101, 2
        %v1103 = vadd.f32 %v1101, %v1102
        %v1104 = vrot.slane %v1103, 1
        %v1105 = vadd.f32 %v1103, %v1104
        %v1106 = vmul.f32 %v1105, %v445
        %v1107 = vld [vmem:[%s4 + $0x60] sm:$0xff]
        %v1108 = vld [vmem:[%s4 + $0x68] sm:$0xff]
        %v1110 = vsel %vm449, %v1106, 0
        %1112 = vmatprep.subr.mxu0 0.0
        %1113 = vmatpush1.msra.mxu0 0.0
        %1114 = vmatprep.subr.mxu0 0.0
        %1115 = vmatpush1.msra.mxu0 0.0
        %1116 = vmatprep.subr.mxu0 0.0
        %1117 = vmatpush1.msra.mxu0 0.0
        %1118 = vmatprep.subr.mxu0 0.0
        %1119 = vmatpush1.msra.mxu0 0.0
        %1120 = vmatprep.subr.mxu0 0.0
        %1121 = vmatpush1.msra.mxu0 0.0
        %1122 = vmatprep.subr.mxu0 0.0
        %1123 = vmatpush1.msra.mxu0 0.0
        %1124 = vmatprep.subr.mxu0 0.0
        %1125 = vmatpush1.msra.mxu0 0.0
        %1126 = vmatprep.subr.mxu0 0.0
        %1127 = vmatpush1.msra.mxu0 0.0
        %1128 = vmatprep.subr.mxu0 0.0
        %1129 = vmatpush1.msra.mxu0 0.0
        %1130 = vmatprep.subr.mxu0 0.0
        %1131 = vmatpush1.msra.mxu0 0.0
        %1132 = vmatprep.subr.mxu0 0.0
        %1133 = vmatpush1.msra.mxu0 0.0
        %1134 = vmatprep.subr.mxu0 0.0
        %1135 = vmatpush1.msra.mxu0 0.0
        %1136 = vmatprep.subr.mxu0 0.0
        %1137 = vmatpush1.msra.mxu0 0.0
        %1138 = vmatprep.subr.mxu0 0.0
        %1139 = vmatpush1.msra.mxu0 0.0
        %1140 = vmatprep.subr.mxu0 0.0
        %1141 = vmatpush1.msra.mxu0 %v1108
        %1142 = vmatprep.subr.mxu0 0.0
        %1143 = vmatpush1.msra.mxu0 %v1107
        %1144 = vmatprep.subr.mxu0 0.0
        %1145 = vmatpush2.msra.mxu0 0.0
        %1146 = vmatprep.subr.mxu0 0.0
        %1147 = vmatpush2.msra.mxu0 0.0
        %1148 = vmatprep.subr.mxu0 0.0
        %1149 = vmatpush2.msra.mxu0 0.0
        %1150 = vmatprep.subr.mxu0 0.0
        %1151 = vmatpush2.msra.mxu0 0.0
        %1152 = vmatprep.subr.mxu0 0.0
        %1153 = vmatpush2.msra.mxu0 0.0
        %1154 = vmatprep.subr.mxu0 0.0
        %1155 = vmatpush2.msra.mxu0 0.0
        %1156 = vmatprep.subr.mxu0 0.0
        %1157 = vmatpush2.msra.mxu0 0.0
        %1158 = vmatprep.subr.mxu0 0.0
        %1159 = vmatpush2.msra.mxu0 0.0
        %1160 = vmatprep.subr.mxu0 0.0
        %1161 = vmatpush2.msra.mxu0 0.0
        %1162 = vmatprep.subr.mxu0 0.0
        %1163 = vmatpush2.msra.mxu0 0.0
        %1164 = vmatprep.subr.mxu0 0.0
        %1165 = vmatpush2.msra.mxu0 0.0
        %1166 = vmatprep.subr.mxu0 0.0
        %1167 = vmatpush2.msra.mxu0 0.0
        %1168 = vmatprep.subr.mxu0 0.0
        %1169 = vmatpush2.msra.mxu0 0.0
        %1170 = vmatprep.subr.mxu0 0.0
        %1171 = vmatpush2.msra.mxu0 0.0
        %1172 = vmatprep.subr.mxu0 0.0
        %1173 = vmatpush2.msra.mxu0 0.0
        %1174 = vmatprep.subr.mxu0 0.0
        %1175 = vmatpush2.msra.mxu0 0.0
        %1176 = vmatprep.mubr.f32.mxu0 0.0
        %1177 = vmatmul.mubr.f32.gmra.mxu0 %v1110
        %v1178 = vpop.f32.mrf.mxu0
        %v1179 = vadd.f32 0.0, %v1178
        %v1180 = vpop.f32.mrf.mxu0
        %1181 = vdwg.mxu0
        %v1182 = vadd.f32 %v1096, %v1179
        %v1183 = vrot.slane %v923, 6
        %v1185 = vsel %vm437, %v1183, 0.0
        %v1186 = vrot.slane %v1185, 4
        %v1187 = vadd.f32 %v1185, %v1186
        %v1188 = vrot.slane %v1187, 2
        %v1189 = vadd.f32 %v1187, %v1188
        %v1190 = vrot.slane %v1189, 1
        %v1191 = vadd.f32 %v1189, %v1190
        %v1192 = vmul.f32 %v1191, %v445
        %v1193 = vld [vmem:[%s4 + $0x70] sm:$0xff]
        %v1194 = vld [vmem:[%s4 + $0x78] sm:$0xff]
        %v1196 = vsel %vm449, %v1192, 0
        %1198 = vmatprep.subr.mxu0 0.0
        %1199 = vmatpush1.msra.mxu0 0.0
        %1200 = vmatprep.subr.mxu0 0.0
        %1201 = vmatpush1.msra.mxu0 0.0
        %1202 = vmatprep.subr.mxu0 0.0
        %1203 = vmatpush1.msra.mxu0 0.0
        %1204 = vmatprep.subr.mxu0 0.0
        %1205 = vmatpush1.msra.mxu0 0.0
        %1206 = vmatprep.subr.mxu0 0.0
        %1207 = vmatpush1.msra.mxu0 0.0
        %1208 = vmatprep.subr.mxu0 0.0
        %1209 = vmatpush1.msra.mxu0 0.0
        %1210 = vmatprep.subr.mxu0 0.0
        %1211 = vmatpush1.msra.mxu0 0.0
        %1212 = vmatprep.subr.mxu0 0.0
        %1213 = vmatpush1.msra.mxu0 0.0
        %1214 = vmatprep.subr.mxu0 0.0
        %1215 = vmatpush1.msra.mxu0 0.0
        %1216 = vmatprep.subr.mxu0 0.0
        %1217 = vmatpush1.msra.mxu0 0.0
        %1218 = vmatprep.subr.mxu0 0.0
        %1219 = vmatpush1.msra.mxu0 0.0
        %1220 = vmatprep.subr.mxu0 0.0
        %1221 = vmatpush1.msra.mxu0 0.0
        %1222 = vmatprep.subr.mxu0 0.0
        %1223 = vmatpush1.msra.mxu0 0.0
        %1224 = vmatprep.subr.mxu0 0.0
        %1225 = vmatpush1.msra.mxu0 0.0
        %1226 = vmatprep.subr.mxu0 0.0
        %1227 = vmatpush1.msra.mxu0 %v1194
        %1228 = vmatprep.subr.mxu0 0.0
        %1229 = vmatpush1.msra.mxu0 %v1193
        %1230 = vmatprep.subr.mxu0 0.0
        %1231 = vmatpush2.msra.mxu0 0.0
        %1232 = vmatprep.subr.mxu0 0.0
        %1233 = vmatpush2.msra.mxu0 0.0
        %1234 = vmatprep.subr.mxu0 0.0
        %1235 = vmatpush2.msra.mxu0 0.0
        %1236 = vmatprep.subr.mxu0 0.0
        %1237 = vmatpush2.msra.mxu0 0.0
        %1238 = vmatprep.subr.mxu0 0.0
        %1239 = vmatpush2.msra.mxu0 0.0
        %1240 = vmatprep.subr.mxu0 0.0
        %1241 = vmatpush2.msra.mxu0 0.0
        %1242 = vmatprep.subr.mxu0 0.0
        %1243 = vmatpush2.msra.mxu0 0.0
        %1244 = vmatprep.subr.mxu0 0.0
        %1245 = vmatpush2.msra.mxu0 0.0
        %1246 = vmatprep.subr.mxu0 0.0
        %1247 = vmatpush2.msra.mxu0 0.0
        %1248 = vmatprep.subr.mxu0 0.0
        %1249 = vmatpush2.msra.mxu0 0.0
        %1250 = vmatprep.subr.mxu0 0.0
        %1251 = vmatpush2.msra.mxu0 0.0
        %1252 = vmatprep.subr.mxu0 0.0
        %1253 = vmatpush2.msra.mxu0 0.0
        %1254 = vmatprep.subr.mxu0 0.0
        %1255 = vmatpush2.msra.mxu0 0.0
        %1256 = vmatprep.subr.mxu0 0.0
        %1257 = vmatpush2.msra.mxu0 0.0
        %1258 = vmatprep.subr.mxu0 0.0
        %1259 = vmatpush2.msra.mxu0 0.0
        %1260 = vmatprep.subr.mxu0 0.0
        %1261 = vmatpush2.msra.mxu0 0.0
        %1262 = vmatprep.mubr.f32.mxu0 0.0
        %1263 = vmatmul.mubr.f32.gmra.mxu0 %v1196
        %v1264 = vpop.f32.mrf.mxu0
        %v1265 = vadd.f32 0.0, %v1264
        %v1266 = vpop.f32.mrf.mxu0
        %1267 = vdwg.mxu0
        %v1268 = vadd.f32 %v1182, %v1265
        %s1269 = sld [smem:[#allocation2 + $0x100]]
        %v1270 = vstv %s1269
        %v1271 = vmul.f32 %v276, %v1270
        %s1272 = sld [smem:[#allocation2 + $0x101]]
        %v1273 = vstv %s1272
        %v1274 = vmul.f32 %v277, %v1273
        %v1275 = vadd.f32 %v1271, %v1274
        %s1276 = sld [smem:[#allocation2 + $0x102]]
        %v1277 = vstv %s1276
        %v1278 = vmul.f32 %v278, %v1277
        %v1279 = vadd.f32 %v1275, %v1278
        %s1280 = sld [smem:[#allocation2 + $0x103]]
        %v1281 = vstv %s1280
        %v1282 = vmul.f32 %v279, %v1281
        %v1283 = vadd.f32 %v1279, %v1282
        %s1284 = sld [smem:[#allocation2 + $0x104]]
        %v1285 = vstv %s1284
        %v1286 = vmul.f32 %v280, %v1285
        %v1287 = vadd.f32 %v1283, %v1286
        %s1288 = sld [smem:[#allocation2 + $0x105]]
        %v1289 = vstv %s1288
        %v1290 = vmul.f32 %v281, %v1289
        %v1291 = vadd.f32 %v1287, %v1290
        %s1292 = sld [smem:[#allocation2 + $0x106]]
        %v1293 = vstv %s1292
        %v1294 = vmul.f32 %v282, %v1293
        %v1295 = vadd.f32 %v1291, %v1294
        %s1296 = sld [smem:[#allocation2 + $0x107]]
        %v1297 = vstv %s1296
        %v1298 = vmul.f32 %v283, %v1297
        %v1299 = vadd.f32 %v1295, %v1298
        %s1300 = sld [smem:[#allocation5 + $0x2]]
        %v1301 = vstv %s1300
        %v1302 = vadd.f32 %v1299, %v1301
        %v1303 = vsel %vm327, %v1302, 0.0
        %1304 = vadd.xlane.f32.xlu0 %v1303
        %v1305 = vpop.xlane.xlu0 %1304
        %v1306 = vrot.slane %v1305, 4
        %v1307 = vadd.f32 %v1305, %v1306
        %v1308 = vrot.slane %v1307, 2
        %v1309 = vadd.f32 %v1307, %v1308
        %v1310 = vrot.slane %v1309, 1
        %v1311 = vadd.f32 %v1309, %v1310
        %s1312 = vtos %v1311
        %v1313 = vrcp.pop 512.0
        %s1314 = vtos %v1313
        %s1315 = smul.f32 %s1312, %s1314
        %v1316 = vstv %s1315
        %v1317 = vsub.f32 %v1302, %v1316
        %v1318 = vmul.f32 %v1317, %v1317
        %v1319 = vsel %vm327, %v1318, 0.0
        %1320 = vadd.xlane.f32.xlu0 %v1319
        %v1321 = vpop.xlane.xlu0 %1320
        %v1322 = vrot.slane %v1321, 4
        %v1323 = vadd.f32 %v1321, %v1322
        %v1324 = vrot.slane %v1323, 2
        %v1325 = vadd.f32 %v1323, %v1324
        %v1326 = vrot.slane %v1325, 1
        %v1327 = vadd.f32 %v1325, %v1326
        %s1328 = vtos %v1327
        %v1329 = vrcp.pop 512.0
        %s1330 = vtos %v1329
        %s1331 = smul.f32 %s1328, %s1330
        %s1332 = sadd.f32 %s1331, 1e-05
        %v1333 = vstv %s1332
        %v1334 = vrsqrt.pop %v1333
        %s1335 = vtos %v1334
        %v1336 = vstv %s1335
        %v1337 = vmul.f32 %v1317, %v1336
        %v1338 = vmax.f32 %v1337, 0.0
        %v1340 = vsel %vm327, %v1338, 0
        %1342 = vmatprep.subr.mxu0 0.0
        %1343 = vmatpush1.msra.mxu0 0.0
        %1344 = vmatprep.subr.mxu0 0.0
        %1345 = vmatpush1.msra.mxu0 0.0
        %1346 = vmatprep.subr.mxu0 0.0
        %1347 = vmatpush1.msra.mxu0 0.0
        %1348 = vmatprep.subr.mxu0 0.0
        %1349 = vmatpush1.msra.mxu0 0.0
        %1350 = vmatprep.subr.mxu0 0.0
        %1351 = vmatpush1.msra.mxu0 0.0
        %1352 = vmatprep.subr.mxu0 0.0
        %1353 = vmatpush1.msra.mxu0 0.0
        %1354 = vmatprep.subr.mxu0 0.0
        %1355 = vmatpush1.msra.mxu0 0.0
        %1356 = vmatprep.subr.mxu0 0.0
        %1357 = vmatpush1.msra.mxu0 0.0
        %1358 = vmatprep.subr.mxu0 0.0
        %1359 = vmatpush1.msra.mxu0 %v291
        %1360 = vmatprep.subr.mxu0 0.0
        %1361 = vmatpush1.msra.mxu0 %v290
        %1362 = vmatprep.subr.mxu0 0.0
        %1363 = vmatpush1.msra.mxu0 %v289
        %1364 = vmatprep.subr.mxu0 0.0
        %1365 = vmatpush1.msra.mxu0 %v288
        %1366 = vmatprep.subr.mxu0 0.0
        %1367 = vmatpush1.msra.mxu0 %v287
        %1368 = vmatprep.subr.mxu0 0.0
        %1369 = vmatpush1.msra.mxu0 %v286
        %1370 = vmatprep.subr.mxu0 0.0
        %1371 = vmatpush1.msra.mxu0 %v285
        %1372 = vmatprep.subr.mxu0 0.0
        %1373 = vmatpush1.msra.mxu0 %v284
        %1374 = vmatprep.subr.mxu0 0.0
        %1375 = vmatpush2.msra.mxu0 0.0
        %1376 = vmatprep.subr.mxu0 0.0
        %1377 = vmatpush2.msra.mxu0 0.0
        %1378 = vmatprep.subr.mxu0 0.0
        %1379 = vmatpush2.msra.mxu0 0.0
        %1380 = vmatprep.subr.mxu0 0.0
        %1381 = vmatpush2.msra.mxu0 0.0
        %1382 = vmatprep.subr.mxu0 0.0
        %1383 = vmatpush2.msra.mxu0 0.0
        %1384 = vmatprep.subr.mxu0 0.0
        %1385 = vmatpush2.msra.mxu0 0.0
        %1386 = vmatprep.subr.mxu0 0.0
        %1387 = vmatpush2.msra.mxu0 0.0
        %1388 = vmatprep.subr.mxu0 0.0
        %1389 = vmatpush2.msra.mxu0 0.0
        %1390 = vmatprep.subr.mxu0 0.0
        %1391 = vmatpush2.msra.mxu0 0.0
        %1392 = vmatprep.subr.mxu0 0.0
        %1393 = vmatpush2.msra.mxu0 0.0
        %1394 = vmatprep.subr.mxu0 0.0
        %1395 = vmatpush2.msra.mxu0 0.0
        %1396 = vmatprep.subr.mxu0 0.0
        %1397 = vmatpush2.msra.mxu0 0.0
        %1398 = vmatprep.subr.mxu0 0.0
        %1399 = vmatpush2.msra.mxu0 0.0
        %1400 = vmatprep.subr.mxu0 0.0
        %1401 = vmatpush2.msra.mxu0 0.0
        %1402 = vmatprep.subr.mxu0 0.0
        %1403 = vmatpush2.msra.mxu0 0.0
        %1404 = vmatprep.subr.mxu0 0.0
        %1405 = vmatpush2.msra.mxu0 0.0
        %1406 = vmatprep.mubr.f32.mxu0 0.0
        %1407 = vmatmul.mubr.f32.gmra.mxu0 %v1340
        %v1408 = vpop.f32.mrf.mxu0
        %v1409 = vadd.f32 0.0, %v1408
        %v1410 = vpop.f32.mrf.mxu0
        %1411 = vdwg.mxu0
        %v1412 = vsel %vm437, %v1409, 0.0
        %v1413 = vrot.slane %v1412, 4
        %v1414 = vadd.f32 %v1412, %v1413
        %v1415 = vrot.slane %v1414, 2
        %v1416 = vadd.f32 %v1414, %v1415
        %v1417 = vrot.slane %v1416, 1
        %v1418 = vadd.f32 %v1416, %v1417
        %v1419 = vmul.f32 %v1418, %v445
        %v1420 = vld [vmem:[%s4 + $0x80] sm:$0xff]
        %v1421 = vld [vmem:[%s4 + $0x88] sm:$0xff]
        %v1423 = vsel %vm449, %v1419, 0
        %1425 = vmatprep.subr.mxu0 0.0
        %1426 = vmatpush1.msra.mxu0 0.0
        %1427 = vmatprep.subr.mxu0 0.0
        %1428 = vmatpush1.msra.mxu0 0.0
        %1429 = vmatprep.subr.mxu0 0.0
        %1430 = vmatpush1.msra.mxu0 0.0
        %1431 = vmatprep.subr.mxu0 0.0
        %1432 = vmatpush1.msra.mxu0 0.0
        %1433 = vmatprep.subr.mxu0 0.0
        %1434 = vmatpush1.msra.mxu0 0.0
        %1435 = vmatprep.subr.mxu0 0.0
        %1436 = vmatpush1.msra.mxu0 0.0
        %1437 = vmatprep.subr.mxu0 0.0
        %1438 = vmatpush1.msra.mxu0 0.0
        %1439 = vmatprep.subr.mxu0 0.0
        %1440 = vmatpush1.msra.mxu0 0.0
        %1441 = vmatprep.subr.mxu0 0.0
        %1442 = vmatpush1.msra.mxu0 0.0
        %1443 = vmatprep.subr.mxu0 0.0
        %1444 = vmatpush1.msra.mxu0 0.0
        %1445 = vmatprep.subr.mxu0 0.0
        %1446 = vmatpush1.msra.mxu0 0.0
        %1447 = vmatprep.subr.mxu0 0.0
        %1448 = vmatpush1.msra.mxu0 0.0
        %1449 = vmatprep.subr.mxu0 0.0
        %1450 = vmatpush1.msra.mxu0 0.0
        %1451 = vmatprep.subr.mxu0 0.0
        %1452 = vmatpush1.msra.mxu0 0.0
        %1453 = vmatprep.subr.mxu0 0.0
        %1454 = vmatpush1.msra.mxu0 %v1421
        %1455 = vmatprep.subr.mxu0 0.0
        %1456 = vmatpush1.msra.mxu0 %v1420
        %1457 = vmatprep.subr.mxu0 0.0
        %1458 = vmatpush2.msra.mxu0 0.0
        %1459 = vmatprep.subr.mxu0 0.0
        %1460 = vmatpush2.msra.mxu0 0.0
        %1461 = vmatprep.subr.mxu0 0.0
        %1462 = vmatpush2.msra.mxu0 0.0
        %1463 = vmatprep.subr.mxu0 0.0
        %1464 = vmatpush2.msra.mxu0 0.0
        %1465 = vmatprep.subr.mxu0 0.0
        %1466 = vmatpush2.msra.mxu0 0.0
        %1467 = vmatprep.subr.mxu0 0.0
        %1468 = vmatpush2.msra.mxu0 0.0
        %1469 = vmatprep.subr.mxu0 0.0
        %1470 = vmatpush2.msra.mxu0 0.0
        %1471 = vmatprep.subr.mxu0 0.0
        %1472 = vmatpush2.msra.mxu0 0.0
        %1473 = vmatprep.subr.mxu0 0.0
        %1474 = vmatpush2.msra.mxu0 0.0
        %1475 = vmatprep.subr.mxu0 0.0
        %1476 = vmatpush2.msra.mxu0 0.0
        %1477 = vmatprep.subr.mxu0 0.0
        %1478 = vmatpush2.msra.mxu0 0.0
        %1479 = vmatprep.subr.mxu0 0.0
        %1480 = vmatpush2.msra.mxu0 0.0
        %1481 = vmatprep.subr.mxu0 0.0
        %1482 = vmatpush2.msra.mxu0 0.0
        %1483 = vmatprep.subr.mxu0 0.0
        %1484 = vmatpush2.msra.mxu0 0.0
        %1485 = vmatprep.subr.mxu0 0.0
        %1486 = vmatpush2.msra.mxu0 0.0
        %1487 = vmatprep.subr.mxu0 0.0
        %1488 = vmatpush2.msra.mxu0 0.0
        %1489 = vmatprep.mubr.f32.mxu0 0.0
        %1490 = vmatmul.mubr.f32.gmra.mxu0 %v1423
        %v1491 = vpop.f32.mrf.mxu0
        %v1492 = vadd.f32 0.0, %v1491
        %v1493 = vpop.f32.mrf.mxu0
        %1494 = vdwg.mxu0
        %v1495 = vadd.f32 %v1268, %v1492
        %v1497 = vrot.slane %v1409, 2
        %v1499 = vsel %vm437, %v1497, 0.0
        %v1500 = vrot.slane %v1499, 4
        %v1501 = vadd.f32 %v1499, %v1500
        %v1502 = vrot.slane %v1501, 2
        %v1503 = vadd.f32 %v1501, %v1502
        %v1504 = vrot.slane %v1503, 1
        %v1505 = vadd.f32 %v1503, %v1504
        %v1506 = vmul.f32 %v1505, %v445
        %v1507 = vld [vmem:[%s4 + $0x90] sm:$0xff]
        %v1508 = vld [vmem:[%s4 + $0x98] sm:$0xff]
        %v1510 = vsel %vm449, %v1506, 0
        %1512 = vmatprep.subr.mxu0 0.0
        %1513 = vmatpush1.msra.mxu0 0.0
        %1514 = vmatprep.subr.mxu0 0.0
        %1515 = vmatpush1.msra.mxu0 0.0
        %1516 = vmatprep.subr.mxu0 0.0
        %1517 = vmatpush1.msra.mxu0 0.0
        %1518 = vmatprep.subr.mxu0 0.0
        %1519 = vmatpush1.msra.mxu0 0.0
        %1520 = vmatprep.subr.mxu0 0.0
        %1521 = vmatpush1.msra.mxu0 0.0
        %1522 = vmatprep.subr.mxu0 0.0
        %1523 = vmatpush1.msra.mxu0 0.0
        %1524 = vmatprep.subr.mxu0 0.0
        %1525 = vmatpush1.msra.mxu0 0.0
        %1526 = vmatprep.subr.mxu0 0.0
        %1527 = vmatpush1.msra.mxu0 0.0
        %1528 = vmatprep.subr.mxu0 0.0
        %1529 = vmatpush1.msra.mxu0 0.0
        %1530 = vmatprep.subr.mxu0 0.0
        %1531 = vmatpush1.msra.mxu0 0.0
        %1532 = vmatprep.subr.mxu0 0.0
        %1533 = vmatpush1.msra.mxu0 0.0
        %1534 = vmatprep.subr.mxu0 0.0
        %1535 = vmatpush1.msra.mxu0 0.0
        %1536 = vmatprep.subr.mxu0 0.0
        %1537 = vmatpush1.msra.mxu0 0.0
        %1538 = vmatprep.subr.mxu0 0.0
        %1539 = vmatpush1.msra.mxu0 0.0
        %1540 = vmatprep.subr.mxu0 0.0
        %1541 = vmatpush1.msra.mxu0 %v1508
        %1542 = vmatprep.subr.mxu0 0.0
        %1543 = vmatpush1.msra.mxu0 %v1507
        %1544 = vmatprep.subr.mxu0 0.0
        %1545 = vmatpush2.msra.mxu0 0.0
        %1546 = vmatprep.subr.mxu0 0.0
        %1547 = vmatpush2.msra.mxu0 0.0
        %1548 = vmatprep.subr.mxu0 0.0
        %1549 = vmatpush2.msra.mxu0 0.0
        %1550 = vmatprep.subr.mxu0 0.0
        %1551 = vmatpush2.msra.mxu0 0.0
        %1552 = vmatprep.subr.mxu0 0.0
        %1553 = vmatpush2.msra.mxu0 0.0
        %1554 = vmatprep.subr.mxu0 0.0
        %1555 = vmatpush2.msra.mxu0 0.0
        %1556 = vmatprep.subr.mxu0 0.0
        %1557 = vmatpush2.msra.mxu0 0.0
        %1558 = vmatprep.subr.mxu0 0.0
        %1559 = vmatpush2.msra.mxu0 0.0
        %1560 = vmatprep.subr.mxu0 0.0
        %1561 = vmatpush2.msra.mxu0 0.0
        %1562 = vmatprep.subr.mxu0 0.0
        %1563 = vmatpush2.msra.mxu0 0.0
        %1564 = vmatprep.subr.mxu0 0.0
        %1565 = vmatpush2.msra.mxu0 0.0
        %1566 = vmatprep.subr.mxu0 0.0
        %1567 = vmatpush2.msra.mxu0 0.0
        %1568 = vmatprep.subr.mxu0 0.0
        %1569 = vmatpush2.msra.mxu0 0.0
        %1570 = vmatprep.subr.mxu0 0.0
        %1571 = vmatpush2.msra.mxu0 0.0
        %1572 = vmatprep.subr.mxu0 0.0
        %1573 = vmatpush2.msra.mxu0 0.0
        %1574 = vmatprep.subr.mxu0 0.0
        %1575 = vmatpush2.msra.mxu0 0.0
        %1576 = vmatprep.mubr.f32.mxu0 0.0
        %1577 = vmatmul.mubr.f32.gmra.mxu0 %v1510
        %v1578 = vpop.f32.mrf.mxu0
        %v1579 = vadd.f32 0.0, %v1578
        %v1580 = vpop.f32.mrf.mxu0
        %1581 = vdwg.mxu0
        %v1582 = vadd.f32 %v1495, %v1579
        %v1583 = vrot.slane %v1409, 4
        %v1585 = vsel %vm437, %v1583, 0.0
        %v1586 = vrot.slane %v1585, 4
        %v1587 = vadd.f32 %v1585, %v1586
        %v1588 = vrot.slane %v1587, 2
        %v1589 = vadd.f32 %v1587, %v1588
        %v1590 = vrot.slane %v1589, 1
        %v1591 = vadd.f32 %v1589, %v1590
        %v1592 = vmul.f32 %v1591, %v445
        %v1593 = vld [vmem:[%s4 + $0xa0] sm:$0xff]
        %v1594 = vld [vmem:[%s4 + $0xa8] sm:$0xff]
        %v1596 = vsel %vm449, %v1592, 0
        %1598 = vmatprep.subr.mxu0 0.0
        %1599 = vmatpush1.msra.mxu0 0.0
        %1600 = vmatprep.subr.mxu0 0.0
        %1601 = vmatpush1.msra.mxu0 0.0
        %1602 = vmatprep.subr.mxu0 0.0
        %1603 = vmatpush1.msra.mxu0 0.0
        %1604 = vmatprep.subr.mxu0 0.0
        %1605 = vmatpush1.msra.mxu0 0.0
        %1606 = vmatprep.subr.mxu0 0.0
        %1607 = vmatpush1.msra.mxu0 0.0
        %1608 = vmatprep.subr.mxu0 0.0
        %1609 = vmatpush1.msra.mxu0 0.0
        %1610 = vmatprep.subr.mxu0 0.0
        %1611 = vmatpush1.msra.mxu0 0.0
        %1612 = vmatprep.subr.mxu0 0.0
        %1613 = vmatpush1.msra.mxu0 0.0
        %1614 = vmatprep.subr.mxu0 0.0
        %1615 = vmatpush1.msra.mxu0 0.0
        %1616 = vmatprep.subr.mxu0 0.0
        %1617 = vmatpush1.msra.mxu0 0.0
        %1618 = vmatprep.subr.mxu0 0.0
        %1619 = vmatpush1.msra.mxu0 0.0
        %1620 = vmatprep.subr.mxu0 0.0
        %1621 = vmatpush1.msra.mxu0 0.0
        %1622 = vmatprep.subr.mxu0 0.0
        %1623 = vmatpush1.msra.mxu0 0.0
        %1624 = vmatprep.subr.mxu0 0.0
        %1625 = vmatpush1.msra.mxu0 0.0
        %1626 = vmatprep.subr.mxu0 0.0
        %1627 = vmatpush1.msra.mxu0 %v1594
        %1628 = vmatprep.subr.mxu0 0.0
        %1629 = vmatpush1.msra.mxu0 %v1593
        %1630 = vmatprep.subr.mxu0 0.0
        %1631 = vmatpush2.msra.mxu0 0.0
        %1632 = vmatprep.subr.mxu0 0.0
        %1633 = vmatpush2.msra.mxu0 0.0
        %1634 = vmatprep.subr.mxu0 0.0
        %1635 = vmatpush2.msra.mxu0 0.0
        %1636 = vmatprep.subr.mxu0 0.0
        %1637 = vmatpush2.msra.mxu0 0.0
        %1638 = vmatprep.subr.mxu0 0.0
        %1639 = vmatpush2.msra.mxu0 0.0
        %1640 = vmatprep.subr.mxu0 0.0
        %1641 = vmatpush2.msra.mxu0 0.0
        %1642 = vmatprep.subr.mxu0 0.0
        %1643 = vmatpush2.msra.mxu0 0.0
        %1644 = vmatprep.subr.mxu0 0.0
        %1645 = vmatpush2.msra.mxu0 0.0
        %1646 = vmatprep.subr.mxu0 0.0
        %1647 = vmatpush2.msra.mxu0 0.0
        %1648 = vmatprep.subr.mxu0 0.0
        %1649 = vmatpush2.msra.mxu0 0.0
        %1650 = vmatprep.subr.mxu0 0.0
        %1651 = vmatpush2.msra.mxu0 0.0
        %1652 = vmatprep.subr.mxu0 0.0
        %1653 = vmatpush2.msra.mxu0 0.0
        %1654 = vmatprep.subr.mxu0 0.0
        %1655 = vmatpush2.msra.mxu0 0.0
        %1656 = vmatprep.subr.mxu0 0.0
        %1657 = vmatpush2.msra.mxu0 0.0
        %1658 = vmatprep.subr.mxu0 0.0
        %1659 = vmatpush2.msra.mxu0 0.0
        %1660 = vmatprep.subr.mxu0 0.0
        %1661 = vmatpush2.msra.mxu0 0.0
        %1662 = vmatprep.mubr.f32.mxu0 0.0
        %1663 = vmatmul.mubr.f32.gmra.mxu0 %v1596
        %v1664 = vpop.f32.mrf.mxu0
        %v1665 = vadd.f32 0.0, %v1664
        %v1666 = vpop.f32.mrf.mxu0
        %1667 = vdwg.mxu0
        %v1668 = vadd.f32 %v1582, %v1665
        %v1669 = vrot.slane %v1409, 6
        %v1671 = vsel %vm437, %v1669, 0.0
        %v1672 = vrot.slane %v1671, 4
        %v1673 = vadd.f32 %v1671, %v1672
        %v1674 = vrot.slane %v1673, 2
        %v1675 = vadd.f32 %v1673, %v1674
        %v1676 = vrot.slane %v1675, 1
        %v1677 = vadd.f32 %v1675, %v1676
        %v1678 = vmul.f32 %v1677, %v445
        %v1679 = vld [vmem:[%s4 + $0xb0] sm:$0xff]
        %v1680 = vld [vmem:[%s4 + $0xb8] sm:$0xff]
        %v1682 = vsel %vm449, %v1678, 0
        %1684 = vmatprep.subr.mxu0 0.0
        %1685 = vmatpush1.msra.mxu0 0.0
        %1686 = vmatprep.subr.mxu0 0.0
        %1687 = vmatpush1.msra.mxu0 0.0
        %1688 = vmatprep.subr.mxu0 0.0
        %1689 = vmatpush1.msra.mxu0 0.0
        %1690 = vmatprep.subr.mxu0 0.0
        %1691 = vmatpush1.msra.mxu0 0.0
        %1692 = vmatprep.subr.mxu0 0.0
        %1693 = vmatpush1.msra.mxu0 0.0
        %1694 = vmatprep.subr.mxu0 0.0
        %1695 = vmatpush1.msra.mxu0 0.0
        %1696 = vmatprep.subr.mxu0 0.0
        %1697 = vmatpush1.msra.mxu0 0.0
        %1698 = vmatprep.subr.mxu0 0.0
        %1699 = vmatpush1.msra.mxu0 0.0
        %1700 = vmatprep.subr.mxu0 0.0
        %1701 = vmatpush1.msra.mxu0 0.0
        %1702 = vmatprep.subr.mxu0 0.0
        %1703 = vmatpush1.msra.mxu0 0.0
        %1704 = vmatprep.subr.mxu0 0.0
        %1705 = vmatpush1.msra.mxu0 0.0
        %1706 = vmatprep.subr.mxu0 0.0
        %1707 = vmatpush1.msra.mxu0 0.0
        %1708 = vmatprep.subr.mxu0 0.0
        %1709 = vmatpush1.msra.mxu0 0.0
        %1710 = vmatprep.subr.mxu0 0.0
        %1711 = vmatpush1.msra.mxu0 0.0
        %1712 = vmatprep.subr.mxu0 0.0
        %1713 = vmatpush1.msra.mxu0 %v1680
        %1714 = vmatprep.subr.mxu0 0.0
        %1715 = vmatpush1.msra.mxu0 %v1679
        %1716 = vmatprep.subr.mxu0 0.0
        %1717 = vmatpush2.msra.mxu0 0.0
        %1718 = vmatprep.subr.mxu0 0.0
        %1719 = vmatpush2.msra.mxu0 0.0
        %1720 = vmatprep.subr.mxu0 0.0
        %1721 = vmatpush2.msra.mxu0 0.0
        %1722 = vmatprep.subr.mxu0 0.0
        %1723 = vmatpush2.msra.mxu0 0.0
        %1724 = vmatprep.subr.mxu0 0.0
        %1725 = vmatpush2.msra.mxu0 0.0
        %1726 = vmatprep.subr.mxu0 0.0
        %1727 = vmatpush2.msra.mxu0 0.0
        %1728 = vmatprep.subr.mxu0 0.0
        %1729 = vmatpush2.msra.mxu0 0.0
        %1730 = vmatprep.subr.mxu0 0.0
        %1731 = vmatpush2.msra.mxu0 0.0
        %1732 = vmatprep.subr.mxu0 0.0
        %1733 = vmatpush2.msra.mxu0 0.0
        %1734 = vmatprep.subr.mxu0 0.0
        %1735 = vmatpush2.msra.mxu0 0.0
        %1736 = vmatprep.subr.mxu0 0.0
        %1737 = vmatpush2.msra.mxu0 0.0
        %1738 = vmatprep.subr.mxu0 0.0
        %1739 = vmatpush2.msra.mxu0 0.0
        %1740 = vmatprep.subr.mxu0 0.0
        %1741 = vmatpush2.msra.mxu0 0.0
        %1742 = vmatprep.subr.mxu0 0.0
        %1743 = vmatpush2.msra.mxu0 0.0
        %1744 = vmatprep.subr.mxu0 0.0
        %1745 = vmatpush2.msra.mxu0 0.0
        %1746 = vmatprep.subr.mxu0 0.0
        %1747 = vmatpush2.msra.mxu0 0.0
        %1748 = vmatprep.mubr.f32.mxu0 0.0
        %1749 = vmatmul.mubr.f32.gmra.mxu0 %v1682
        %v1750 = vpop.f32.mrf.mxu0
        %v1751 = vadd.f32 0.0, %v1750
        %v1752 = vpop.f32.mrf.mxu0
        %1753 = vdwg.mxu0
        %v1754 = vadd.f32 %v1668, %v1751
        %s1755 = sld [smem:[#allocation2 + $0x180]]
        %v1756 = vstv %s1755
        %v1757 = vmul.f32 %v276, %v1756
        %s1758 = sld [smem:[#allocation2 + $0x181]]
        %v1759 = vstv %s1758
        %v1760 = vmul.f32 %v277, %v1759
        %v1761 = vadd.f32 %v1757, %v1760
        %s1762 = sld [smem:[#allocation2 + $0x182]]
        %v1763 = vstv %s1762
        %v1764 = vmul.f32 %v278, %v1763
        %v1765 = vadd.f32 %v1761, %v1764
        %s1766 = sld [smem:[#allocation2 + $0x183]]
        %v1767 = vstv %s1766
        %v1768 = vmul.f32 %v279, %v1767
        %v1769 = vadd.f32 %v1765, %v1768
        %s1770 = sld [smem:[#allocation2 + $0x184]]
        %v1771 = vstv %s1770
        %v1772 = vmul.f32 %v280, %v1771
        %v1773 = vadd.f32 %v1769, %v1772
        %s1774 = sld [smem:[#allocation2 + $0x185]]
        %v1775 = vstv %s1774
        %v1776 = vmul.f32 %v281, %v1775
        %v1777 = vadd.f32 %v1773, %v1776
        %s1778 = sld [smem:[#allocation2 + $0x186]]
        %v1779 = vstv %s1778
        %v1780 = vmul.f32 %v282, %v1779
        %v1781 = vadd.f32 %v1777, %v1780
        %s1782 = sld [smem:[#allocation2 + $0x187]]
        %v1783 = vstv %s1782
        %v1784 = vmul.f32 %v283, %v1783
        %v1785 = vadd.f32 %v1781, %v1784
        %s1786 = sld [smem:[#allocation5 + $0x3]]
        %v1787 = vstv %s1786
        %v1788 = vadd.f32 %v1785, %v1787
        %v1789 = vsel %vm327, %v1788, 0.0
        %1790 = vadd.xlane.f32.xlu0 %v1789
        %v1791 = vpop.xlane.xlu0 %1790
        %v1792 = vrot.slane %v1791, 4
        %v1793 = vadd.f32 %v1791, %v1792
        %v1794 = vrot.slane %v1793, 2
        %v1795 = vadd.f32 %v1793, %v1794
        %v1796 = vrot.slane %v1795, 1
        %v1797 = vadd.f32 %v1795, %v1796
        %s1798 = vtos %v1797
        %v1799 = vrcp.pop 512.0
        %s1800 = vtos %v1799
        %s1801 = smul.f32 %s1798, %s1800
        %v1802 = vstv %s1801
        %v1803 = vsub.f32 %v1788, %v1802
        %v1804 = vmul.f32 %v1803, %v1803
        %v1805 = vsel %vm327, %v1804, 0.0
        %1806 = vadd.xlane.f32.xlu0 %v1805
        %v1807 = vpop.xlane.xlu0 %1806
        %v1808 = vrot.slane %v1807, 4
        %v1809 = vadd.f32 %v1807, %v1808
        %v1810 = vrot.slane %v1809, 2
        %v1811 = vadd.f32 %v1809, %v1810
        %v1812 = vrot.slane %v1811, 1
        %v1813 = vadd.f32 %v1811, %v1812
        %s1814 = vtos %v1813
        %v1815 = vrcp.pop 512.0
        %s1816 = vtos %v1815
        %s1817 = smul.f32 %s1814, %s1816
        %s1818 = sadd.f32 %s1817, 1e-05
        %v1819 = vstv %s1818
        %v1820 = vrsqrt.pop %v1819
        %s1821 = vtos %v1820
        %v1822 = vstv %s1821
        %v1823 = vmul.f32 %v1803, %v1822
        %v1824 = vmax.f32 %v1823, 0.0
        %v1826 = vsel %vm327, %v1824, 0
        %1828 = vmatprep.subr.mxu0 0.0
        %1829 = vmatpush1.msra.mxu0 0.0
        %1830 = vmatprep.subr.mxu0 0.0
        %1831 = vmatpush1.msra.mxu0 0.0
        %1832 = vmatprep.subr.mxu0 0.0
        %1833 = vmatpush1.msra.mxu0 0.0
        %1834 = vmatprep.subr.mxu0 0.0
        %1835 = vmatpush1.msra.mxu0 0.0
        %1836 = vmatprep.subr.mxu0 0.0
        %1837 = vmatpush1.msra.mxu0 0.0
        %1838 = vmatprep.subr.mxu0 0.0
        %1839 = vmatpush1.msra.mxu0 0.0
        %1840 = vmatprep.subr.mxu0 0.0
        %1841 = vmatpush1.msra.mxu0 0.0
        %1842 = vmatprep.subr.mxu0 0.0
        %1843 = vmatpush1.msra.mxu0 0.0
        %1844 = vmatprep.subr.mxu0 0.0
        %1845 = vmatpush1.msra.mxu0 %v291
        %1846 = vmatprep.subr.mxu0 0.0
        %1847 = vmatpush1.msra.mxu0 %v290
        %1848 = vmatprep.subr.mxu0 0.0
        %1849 = vmatpush1.msra.mxu0 %v289
        %1850 = vmatprep.subr.mxu0 0.0
        %1851 = vmatpush1.msra.mxu0 %v288
        %1852 = vmatprep.subr.mxu0 0.0
        %1853 = vmatpush1.msra.mxu0 %v287
        %1854 = vmatprep.subr.mxu0 0.0
        %1855 = vmatpush1.msra.mxu0 %v286
        %1856 = vmatprep.subr.mxu0 0.0
        %1857 = vmatpush1.msra.mxu0 %v285
        %1858 = vmatprep.subr.mxu0 0.0
        %1859 = vmatpush1.msra.mxu0 %v284
        %1860 = vmatprep.subr.mxu0 0.0
        %1861 = vmatpush2.msra.mxu0 0.0
        %1862 = vmatprep.subr.mxu0 0.0
        %1863 = vmatpush2.msra.mxu0 0.0
        %1864 = vmatprep.subr.mxu0 0.0
        %1865 = vmatpush2.msra.mxu0 0.0
        %1866 = vmatprep.subr.mxu0 0.0
        %1867 = vmatpush2.msra.mxu0 0.0
        %1868 = vmatprep.subr.mxu0 0.0
        %1869 = vmatpush2.msra.mxu0 0.0
        %1870 = vmatprep.subr.mxu0 0.0
        %1871 = vmatpush2.msra.mxu0 0.0
        %1872 = vmatprep.subr.mxu0 0.0
        %1873 = vmatpush2.msra.mxu0 0.0
        %1874 = vmatprep.subr.mxu0 0.0
        %1875 = vmatpush2.msra.mxu0 0.0
        %1876 = vmatprep.subr.mxu0 0.0
        %1877 = vmatpush2.msra.mxu0 0.0
        %1878 = vmatprep.subr.mxu0 0.0
        %1879 = vmatpush2.msra.mxu0 0.0
        %1880 = vmatprep.subr.mxu0 0.0
        %1881 = vmatpush2.msra.mxu0 0.0
        %1882 = vmatprep.subr.mxu0 0.0
        %1883 = vmatpush2.msra.mxu0 0.0
        %1884 = vmatprep.subr.mxu0 0.0
        %1885 = vmatpush2.msra.mxu0 0.0
        %1886 = vmatprep.subr.mxu0 0.0
        %1887 = vmatpush2.msra.mxu0 0.0
        %1888 = vmatprep.subr.mxu0 0.0
        %1889 = vmatpush2.msra.mxu0 0.0
        %1890 = vmatprep.subr.mxu0 0.0
        %1891 = vmatpush2.msra.mxu0 0.0
        %1892 = vmatprep.mubr.f32.mxu0 0.0
        %1893 = vmatmul.mubr.f32.gmra.mxu0 %v1826
        %v1894 = vpop.f32.mrf.mxu0
        %v1895 = vadd.f32 0.0, %v1894
        %v1896 = vpop.f32.mrf.mxu0
        %1897 = vdwg.mxu0
        %v1898 = vsel %vm437, %v1895, 0.0
        %v1899 = vrot.slane %v1898, 4
        %v1900 = vadd.f32 %v1898, %v1899
        %v1901 = vrot.slane %v1900, 2
        %v1902 = vadd.f32 %v1900, %v1901
        %v1903 = vrot.slane %v1902, 1
        %v1904 = vadd.f32 %v1902, %v1903
        %v1905 = vmul.f32 %v1904, %v445
        %v1906 = vld [vmem:[%s4 + $0xc0] sm:$0xff]
        %v1907 = vld [vmem:[%s4 + $0xc8] sm:$0xff]
        %v1909 = vsel %vm449, %v1905, 0
        %1911 = vmatprep.subr.mxu0 0.0
        %1912 = vmatpush1.msra.mxu0 0.0
        %1913 = vmatprep.subr.mxu0 0.0
        %1914 = vmatpush1.msra.mxu0 0.0
        %1915 = vmatprep.subr.mxu0 0.0
        %1916 = vmatpush1.msra.mxu0 0.0
        %1917 = vmatprep.subr.mxu0 0.0
        %1918 = vmatpush1.msra.mxu0 0.0
        %1919 = vmatprep.subr.mxu0 0.0
        %1920 = vmatpush1.msra.mxu0 0.0
        %1921 = vmatprep.subr.mxu0 0.0
        %1922 = vmatpush1.msra.mxu0 0.0
        %1923 = vmatprep.subr.mxu0 0.0
        %1924 = vmatpush1.msra.mxu0 0.0
        %1925 = vmatprep.subr.mxu0 0.0
        %1926 = vmatpush1.msra.mxu0 0.0
        %1927 = vmatprep.subr.mxu0 0.0
        %1928 = vmatpush1.msra.mxu0 0.0
        %1929 = vmatprep.subr.mxu0 0.0
        %1930 = vmatpush1.msra.mxu0 0.0
        %1931 = vmatprep.subr.mxu0 0.0
        %1932 = vmatpush1.msra.mxu0 0.0
        %1933 = vmatprep.subr.mxu0 0.0
        %1934 = vmatpush1.msra.mxu0 0.0
        %1935 = vmatprep.subr.mxu0 0.0
        %1936 = vmatpush1.msra.mxu0 0.0
        %1937 = vmatprep.subr.mxu0 0.0
        %1938 = vmatpush1.msra.mxu0 0.0
        %1939 = vmatprep.subr.mxu0 0.0
        %1940 = vmatpush1.msra.mxu0 %v1907
        %1941 = vmatprep.subr.mxu0 0.0
        %1942 = vmatpush1.msra.mxu0 %v1906
        %1943 = vmatprep.subr.mxu0 0.0
        %1944 = vmatpush2.msra.mxu0 0.0
        %1945 = vmatprep.subr.mxu0 0.0
        %1946 = vmatpush2.msra.mxu0 0.0
        %1947 = vmatprep.subr.mxu0 0.0
        %1948 = vmatpush2.msra.mxu0 0.0
        %1949 = vmatprep.subr.mxu0 0.0
        %1950 = vmatpush2.msra.mxu0 0.0
        %1951 = vmatprep.subr.mxu0 0.0
        %1952 = vmatpush2.msra.mxu0 0.0
        %1953 = vmatprep.subr.mxu0 0.0
        %1954 = vmatpush2.msra.mxu0 0.0
        %1955 = vmatprep.subr.mxu0 0.0
        %1956 = vmatpush2.msra.mxu0 0.0
        %1957 = vmatprep.subr.mxu0 0.0
        %1958 = vmatpush2.msra.mxu0 0.0
        %1959 = vmatprep.subr.mxu0 0.0
        %1960 = vmatpush2.msra.mxu0 0.0
        %1961 = vmatprep.subr.mxu0 0.0
        %1962 = vmatpush2.msra.mxu0 0.0
        %1963 = vmatprep.subr.mxu0 0.0
        %1964 = vmatpush2.msra.mxu0 0.0
        %1965 = vmatprep.subr.mxu0 0.0
        %1966 = vmatpush2.msra.mxu0 0.0
        %1967 = vmatprep.subr.mxu0 0.0
        %1968 = vmatpush2.msra.mxu0 0.0
        %1969 = vmatprep.subr.mxu0 0.0
        %1970 = vmatpush2.msra.mxu0 0.0
        %1971 = vmatprep.subr.mxu0 0.0
        %1972 = vmatpush2.msra.mxu0 0.0
        %1973 = vmatprep.subr.mxu0 0.0
        %1974 = vmatpush2.msra.mxu0 0.0
        %1975 = vmatprep.mubr.f32.mxu0 0.0
        %1976 = vmatmul.mubr.f32.gmra.mxu0 %v1909
        %v1977 = vpop.f32.mrf.mxu0
        %v1978 = vadd.f32 0.0, %v1977
        %v1979 = vpop.f32.mrf.mxu0
        %1980 = vdwg.mxu0
        %v1981 = vadd.f32 %v1754, %v1978
        %v1983 = vrot.slane %v1895, 2
        %v1985 = vsel %vm437, %v1983, 0.0
        %v1986 = vrot.slane %v1985, 4
        %v1987 = vadd.f32 %v1985, %v1986
        %v1988 = vrot.slane %v1987, 2
        %v1989 = vadd.f32 %v1987, %v1988
        %v1990 = vrot.slane %v1989, 1
        %v1991 = vadd.f32 %v1989, %v1990
        %v1992 = vmul.f32 %v1991, %v445
        %v1993 = vld [vmem:[%s4 + $0xd0] sm:$0xff]
        %v1994 = vld [vmem:[%s4 + $0xd8] sm:$0xff]
        %v1996 = vsel %vm449, %v1992, 0
        %1998 = vmatprep.subr.mxu0 0.0
        %1999 = vmatpush1.msra.mxu0 0.0
        %2000 = vmatprep.subr.mxu0 0.0
        %2001 = vmatpush1.msra.mxu0 0.0
        %2002 = vmatprep.subr.mxu0 0.0
        %2003 = vmatpush1.msra.mxu0 0.0
        %2004 = vmatprep.subr.mxu0 0.0
        %2005 = vmatpush1.msra.mxu0 0.0
        %2006 = vmatprep.subr.mxu0 0.0
        %2007 = vmatpush1.msra.mxu0 0.0
        %2008 = vmatprep.subr.mxu0 0.0
        %2009 = vmatpush1.msra.mxu0 0.0
        %2010 = vmatprep.subr.mxu0 0.0
        %2011 = vmatpush1.msra.mxu0 0.0
        %2012 = vmatprep.subr.mxu0 0.0
        %2013 = vmatpush1.msra.mxu0 0.0
        %2014 = vmatprep.subr.mxu0 0.0
        %2015 = vmatpush1.msra.mxu0 0.0
        %2016 = vmatprep.subr.mxu0 0.0
        %2017 = vmatpush1.msra.mxu0 0.0
        %2018 = vmatprep.subr.mxu0 0.0
        %2019 = vmatpush1.msra.mxu0 0.0
        %2020 = vmatprep.subr.mxu0 0.0
        %2021 = vmatpush1.msra.mxu0 0.0
        %2022 = vmatprep.subr.mxu0 0.0
        %2023 = vmatpush1.msra.mxu0 0.0
        %2024 = vmatprep.subr.mxu0 0.0
        %2025 = vmatpush1.msra.mxu0 0.0
        %2026 = vmatprep.subr.mxu0 0.0
        %2027 = vmatpush1.msra.mxu0 %v1994
        %2028 = vmatprep.subr.mxu0 0.0
        %2029 = vmatpush1.msra.mxu0 %v1993
        %2030 = vmatprep.subr.mxu0 0.0
        %2031 = vmatpush2.msra.mxu0 0.0
        %2032 = vmatprep.subr.mxu0 0.0
        %2033 = vmatpush2.msra.mxu0 0.0
        %2034 = vmatprep.subr.mxu0 0.0
        %2035 = vmatpush2.msra.mxu0 0.0
        %2036 = vmatprep.subr.mxu0 0.0
        %2037 = vmatpush2.msra.mxu0 0.0
        %2038 = vmatprep.subr.mxu0 0.0
        %2039 = vmatpush2.msra.mxu0 0.0
        %2040 = vmatprep.subr.mxu0 0.0
        %2041 = vmatpush2.msra.mxu0 0.0
        %2042 = vmatprep.subr.mxu0 0.0
        %2043 = vmatpush2.msra.mxu0 0.0
        %2044 = vmatprep.subr.mxu0 0.0
        %2045 = vmatpush2.msra.mxu0 0.0
        %2046 = vmatprep.subr.mxu0 0.0
        %2047 = vmatpush2.msra.mxu0 0.0
        %2048 = vmatprep.subr.mxu0 0.0
        %2049 = vmatpush2.msra.mxu0 0.0
        %2050 = vmatprep.subr.mxu0 0.0
        %2051 = vmatpush2.msra.mxu0 0.0
        %2052 = vmatprep.subr.mxu0 0.0
        %2053 = vmatpush2.msra.mxu0 0.0
        %2054 = vmatprep.subr.mxu0 0.0
        %2055 = vmatpush2.msra.mxu0 0.0
        %2056 = vmatprep.subr.mxu0 0.0
        %2057 = vmatpush2.msra.mxu0 0.0
        %2058 = vmatprep.subr.mxu0 0.0
        %2059 = vmatpush2.msra.mxu0 0.0
        %2060 = vmatprep.subr.mxu0 0.0
        %2061 = vmatpush2.msra.mxu0 0.0
        %2062 = vmatprep.mubr.f32.mxu0 0.0
        %2063 = vmatmul.mubr.f32.gmra.mxu0 %v1996
        %v2064 = vpop.f32.mrf.mxu0
        %v2065 = vadd.f32 0.0, %v2064
        %v2066 = vpop.f32.mrf.mxu0
        %2067 = vdwg.mxu0
        %v2068 = vadd.f32 %v1981, %v2065
        %v2069 = vrot.slane %v1895, 4
        %v2071 = vsel %vm437, %v2069, 0.0
        %v2072 = vrot.slane %v2071, 4
        %v2073 = vadd.f32 %v2071, %v2072
        %v2074 = vrot.slane %v2073, 2
        %v2075 = vadd.f32 %v2073, %v2074
        %v2076 = vrot.slane %v2075, 1
        %v2077 = vadd.f32 %v2075, %v2076
        %v2078 = vmul.f32 %v2077, %v445
        %v2079 = vld [vmem:[%s4 + $0xe0] sm:$0xff]
        %v2080 = vld [vmem:[%s4 + $0xe8] sm:$0xff]
        %v2082 = vsel %vm449, %v2078, 0
        %2084 = vmatprep.subr.mxu0 0.0
        %2085 = vmatpush1.msra.mxu0 0.0
        %2086 = vmatprep.subr.mxu0 0.0
        %2087 = vmatpush1.msra.mxu0 0.0
        %2088 = vmatprep.subr.mxu0 0.0
        %2089 = vmatpush1.msra.mxu0 0.0
        %2090 = vmatprep.subr.mxu0 0.0
        %2091 = vmatpush1.msra.mxu0 0.0
        %2092 = vmatprep.subr.mxu0 0.0
        %2093 = vmatpush1.msra.mxu0 0.0
        %2094 = vmatprep.subr.mxu0 0.0
        %2095 = vmatpush1.msra.mxu0 0.0
        %2096 = vmatprep.subr.mxu0 0.0
        %2097 = vmatpush1.msra.mxu0 0.0
        %2098 = vmatprep.subr.mxu0 0.0
        %2099 = vmatpush1.msra.mxu0 0.0
        %2100 = vmatprep.subr.mxu0 0.0
        %2101 = vmatpush1.msra.mxu0 0.0
        %2102 = vmatprep.subr.mxu0 0.0
        %2103 = vmatpush1.msra.mxu0 0.0
        %2104 = vmatprep.subr.mxu0 0.0
        %2105 = vmatpush1.msra.mxu0 0.0
        %2106 = vmatprep.subr.mxu0 0.0
        %2107 = vmatpush1.msra.mxu0 0.0
        %2108 = vmatprep.subr.mxu0 0.0
        %2109 = vmatpush1.msra.mxu0 0.0
        %2110 = vmatprep.subr.mxu0 0.0
        %2111 = vmatpush1.msra.mxu0 0.0
        %2112 = vmatprep.subr.mxu0 0.0
        %2113 = vmatpush1.msra.mxu0 %v2080
        %2114 = vmatprep.subr.mxu0 0.0
        %2115 = vmatpush1.msra.mxu0 %v2079
        %2116 = vmatprep.subr.mxu0 0.0
        %2117 = vmatpush2.msra.mxu0 0.0
        %2118 = vmatprep.subr.mxu0 0.0
        %2119 = vmatpush2.msra.mxu0 0.0
        %2120 = vmatprep.subr.mxu0 0.0
        %2121 = vmatpush2.msra.mxu0 0.0
        %2122 = vmatprep.subr.mxu0 0.0
        %2123 = vmatpush2.msra.mxu0 0.0
        %2124 = vmatprep.subr.mxu0 0.0
        %2125 = vmatpush2.msra.mxu0 0.0
        %2126 = vmatprep.subr.mxu0 0.0
        %2127 = vmatpush2.msra.mxu0 0.0
        %2128 = vmatprep.subr.mxu0 0.0
        %2129 = vmatpush2.msra.mxu0 0.0
        %2130 = vmatprep.subr.mxu0 0.0
        %2131 = vmatpush2.msra.mxu0 0.0
        %2132 = vmatprep.subr.mxu0 0.0
        %2133 = vmatpush2.msra.mxu0 0.0
        %2134 = vmatprep.subr.mxu0 0.0
        %2135 = vmatpush2.msra.mxu0 0.0
        %2136 = vmatprep.subr.mxu0 0.0
        %2137 = vmatpush2.msra.mxu0 0.0
        %2138 = vmatprep.subr.mxu0 0.0
        %2139 = vmatpush2.msra.mxu0 0.0
        %2140 = vmatprep.subr.mxu0 0.0
        %2141 = vmatpush2.msra.mxu0 0.0
        %2142 = vmatprep.subr.mxu0 0.0
        %2143 = vmatpush2.msra.mxu0 0.0
        %2144 = vmatprep.subr.mxu0 0.0
        %2145 = vmatpush2.msra.mxu0 0.0
        %2146 = vmatprep.subr.mxu0 0.0
        %2147 = vmatpush2.msra.mxu0 0.0
        %2148 = vmatprep.mubr.f32.mxu0 0.0
        %2149 = vmatmul.mubr.f32.gmra.mxu0 %v2082
        %v2150 = vpop.f32.mrf.mxu0
        %v2151 = vadd.f32 0.0, %v2150
        %v2152 = vpop.f32.mrf.mxu0
        %2153 = vdwg.mxu0
        %v2154 = vadd.f32 %v2068, %v2151
        %v2155 = vrot.slane %v1895, 6
        %v2157 = vsel %vm437, %v2155, 0.0
        %v2158 = vrot.slane %v2157, 4
        %v2159 = vadd.f32 %v2157, %v2158
        %v2160 = vrot.slane %v2159, 2
        %v2161 = vadd.f32 %v2159, %v2160
        %v2162 = vrot.slane %v2161, 1
        %v2163 = vadd.f32 %v2161, %v2162
        %v2164 = vmul.f32 %v2163, %v445
        %v2165 = vld [vmem:[%s4 + $0xf0] sm:$0xff]
        %v2166 = vld [vmem:[%s4 + $0xf8] sm:$0xff]
        %v2168 = vsel %vm449, %v2164, 0
        %2170 = vmatprep.subr.mxu0 0.0
        %2171 = vmatpush1.msra.mxu0 0.0
        %2172 = vmatprep.subr.mxu0 0.0
        %2173 = vmatpush1.msra.mxu0 0.0
        %2174 = vmatprep.subr.mxu0 0.0
        %2175 = vmatpush1.msra.mxu0 0.0
        %2176 = vmatprep.subr.mxu0 0.0
        %2177 = vmatpush1.msra.mxu0 0.0
        %2178 = vmatprep.subr.mxu0 0.0
        %2179 = vmatpush1.msra.mxu0 0.0
        %2180 = vmatprep.subr.mxu0 0.0
        %2181 = vmatpush1.msra.mxu0 0.0
        %2182 = vmatprep.subr.mxu0 0.0
        %2183 = vmatpush1.msra.mxu0 0.0
        %2184 = vmatprep.subr.mxu0 0.0
        %2185 = vmatpush1.msra.mxu0 0.0
        %2186 = vmatprep.subr.mxu0 0.0
        %2187 = vmatpush1.msra.mxu0 0.0
        %2188 = vmatprep.subr.mxu0 0.0
        %2189 = vmatpush1.msra.mxu0 0.0
        %2190 = vmatprep.subr.mxu0 0.0
        %2191 = vmatpush1.msra.mxu0 0.0
        %2192 = vmatprep.subr.mxu0 0.0
        %2193 = vmatpush1.msra.mxu0 0.0
        %2194 = vmatprep.subr.mxu0 0.0
        %2195 = vmatpush1.msra.mxu0 0.0
        %2196 = vmatprep.subr.mxu0 0.0
        %2197 = vmatpush1.msra.mxu0 0.0
        %2198 = vmatprep.subr.mxu0 0.0
        %2199 = vmatpush1.msra.mxu0 %v2166
        %2200 = vmatprep.subr.mxu0 0.0
        %2201 = vmatpush1.msra.mxu0 %v2165
        %2202 = vmatprep.subr.mxu0 0.0
        %2203 = vmatpush2.msra.mxu0 0.0
        %2204 = vmatprep.subr.mxu0 0.0
        %2205 = vmatpush2.msra.mxu0 0.0
        %2206 = vmatprep.subr.mxu0 0.0
        %2207 = vmatpush2.msra.mxu0 0.0
        %2208 = vmatprep.subr.mxu0 0.0
        %2209 = vmatpush2.msra.mxu0 0.0
        %2210 = vmatprep.subr.mxu0 0.0
        %2211 = vmatpush2.msra.mxu0 0.0
        %2212 = vmatprep.subr.mxu0 0.0
        %2213 = vmatpush2.msra.mxu0 0.0
        %2214 = vmatprep.subr.mxu0 0.0
        %2215 = vmatpush2.msra.mxu0 0.0
        %2216 = vmatprep.subr.mxu0 0.0
        %2217 = vmatpush2.msra.mxu0 0.0
        %2218 = vmatprep.subr.mxu0 0.0
        %2219 = vmatpush2.msra.mxu0 0.0
        %2220 = vmatprep.subr.mxu0 0.0
        %2221 = vmatpush2.msra.mxu0 0.0
        %2222 = vmatprep.subr.mxu0 0.0
        %2223 = vmatpush2.msra.mxu0 0.0
        %2224 = vmatprep.subr.mxu0 0.0
        %2225 = vmatpush2.msra.mxu0 0.0
        %2226 = vmatprep.subr.mxu0 0.0
        %2227 = vmatpush2.msra.mxu0 0.0
        %2228 = vmatprep.subr.mxu0 0.0
        %2229 = vmatpush2.msra.mxu0 0.0
        %2230 = vmatprep.subr.mxu0 0.0
        %2231 = vmatpush2.msra.mxu0 0.0
        %2232 = vmatprep.subr.mxu0 0.0
        %2233 = vmatpush2.msra.mxu0 0.0
        %2234 = vmatprep.mubr.f32.mxu0 0.0
        %2235 = vmatmul.mubr.f32.gmra.mxu0 %v2168
        %v2236 = vpop.f32.mrf.mxu0
        %v2237 = vadd.f32 0.0, %v2236
        %v2238 = vpop.f32.mrf.mxu0
        %2239 = vdwg.mxu0
        %v2240 = vadd.f32 %v2154, %v2237
        %vm2241 = vcmask 122880
        %2242 = vst.msk [vmem:[%s270] sm:$0x1] %vm2241, %v2240
        %s2243 = sand.u32 %s161, 1
        %s2244 = scalar_lea.sflag [#allocation3], %s2243
        %s2245 = sand.u32 %s161, 1
        %s2246 = scalar_lea.vmem [#allocation7], %s2245
        // Predicated region
        $region53: #{gating_forward.1} parent=43 // pred_check
          %p2247 = pneg %p171
        $region54: #{gating_forward.1} parent=43 // pred_check_branch
          %2249 = sbr.rel (%p2247) target = $region56
        $region55: #{gating_forward.1} parent=43 // pred_region
          %s2251 = ssub.s32 16, 16
          %2252 = vsyncadd %s2244, %s2251
          %s2253 = smul.addr %s22, 16
          %s2254 = scalar_lea.hbm %s6, %s2253
          %s2256 = sshll.u32 %s2246, 4
          %s2257 = int_to_ptr.vmem [resolvable:$true] %s2256
          %2259 = dma.vmem_to_hbm [thread:$0]  %s2257, 16, %s2254, %s2244
        $region56: #{gating_forward.1} parent=43 // pred_fallthru
          _
      $region44: #{gating_forward.1} parent=5 // pred_fallthru
        _
      %p2260 = scmp.le.s32.totalorder 2, %s17
      // Predicated region
      $region57: #{gating_forward.1} parent=5 // pred_check
        %p2261 = pneg %p2260
      $region58: #{gating_forward.1} parent=5 // pred_check_branch
        %2263 = sbr.rel (%p2261) target = $region60
      $region59: #{gating_forward.1} parent=5 // pred_region
        %s2264 = ssub.s32 %s17, 2
        // Predicated region
        $region61: #{gating_forward.1} parent=59 // pred_check
          %p2265 = pneg %p177
        $region62: #{gating_forward.1} parent=59 // pred_check_branch
          %2267 = sbr.rel (%p2265) target = $region64
        $region63: #{gating_forward.1} parent=59 // pred_region
          %s2268 = sand.u32 %s162, 1
          %s2269 = scalar_lea.sflag [#allocation3], %s2268
          %s2270 = sand.u32 %s162, 1
          %s2271 = scalar_lea.vmem [#allocation7], %s2270
          %2272 = dma.done %s2269, 16
        $region64: #{gating_forward.1} parent=59 // pred_fallthru
          _
      $region60: #{gating_forward.1} parent=5 // pred_fallthru
        _
    $region6: #{gating_forward.1} parent=1 // loop_footer
      %s21 = sadd.s32 1, %s17
    $region7: #{gating_forward.1} parent=1 // loop_footer_branch
      %16 = sbr.rel target = $region3
    $region8: #{gating_forward.1} parent=1 // loop_exit
      _
    %2273 = vsyncpa [#allocation3], 1
    %s2274 = scalar_lea.sflag [#allocation3], 1
    %2275 = vsyncpa %s2274, 1
    %2276 = vsyncpa [#allocation4], 1
    %s2277 = scalar_lea.sflag [#allocation4], 1
    %2278 = vsyncpa %s2277, 1
    %2279 = vsyncpa [#allocation6], 1

</llo_original>
